<compile_context>
chip_gen: v7x
topology: tpu7x:2x2x1
jax: 0.10.0
libtpu: 0.0.40
codegen_flags: <defaults>
</compile_context>

<pallas_src>
import functools
import math

import jax
import jax.numpy as jnp
from jax import lax
from jax.experimental import pallas as pl
from jax.experimental.pallas import tpu as pltpu


def _round_up(x, m):
    return ((x + m - 1) // m) * m


def _vmem_capacity_bytes():
    try:
        return int(pltpu.get_tpu_info().vmem_capacity_bytes)
    except Exception:
        return 64 * 1024 * 1024  # conservative: v7x per-core VMEM


def _pick_q_tile(Sq, Skp, Hp, attn_bytes, vmem_cap):
    """Pick the query tile so the per-step resident set fits VMEM."""
    budget = int(vmem_cap * 0.8)
    fixed = (2 * 2 * Skp * Hp * 2       # K, V double-buffered bf16
             + 2 * Skp * 4              # mask bias double-buffered f32
             + Hp * Hp * 2 + Hp * 4)    # Q weight/bias (single-buffered)

    def est(tq):
        return (fixed
                + 2 * tq * Hp * 2               # span, double-buffered bf16
                + 2 * tq * Hp * 4               # out, double-buffered f32
                + 2 * tq * Skp * attn_bytes     # attn, double-buffered
                + tq * Skp * 8                  # scores + exp f32 intermediates
                + tq * Hp * 8)                  # q f32/bf16 intermediates

    tq = 512
    while tq > 16 and est(tq) > budget:
        tq //= 2
    tq = min(tq, _round_up(Sq, 16))
    return tq, est(tq)


# ---------------------------------------------------------------------------
# Kernel 1: K / V projections as one packed GEMM over M = B * Sk rows.
# ---------------------------------------------------------------------------
def kv_projection_kernel(seq_ref, kw_ref, kb_ref, vw_ref, vb_ref, k_ref, v_ref):
    seq = seq_ref[...]                                   # (TM, Hp) bf16
    k = jnp.dot(seq, kw_ref[...], preferred_element_type=jnp.float32) + kb_ref[0]
    v = jnp.dot(seq, vw_ref[...], preferred_element_type=jnp.float32) + vb_ref[0]
    k_ref[...] = k.astype(k_ref.dtype)
    v_ref[...] = v.astype(v_ref.dtype)


# ---------------------------------------------------------------------------
# Kernel 2: fused Q projection + masked softmax attention.
# ---------------------------------------------------------------------------
def span_attention_kernel(span_ref, k_ref, v_ref, bias_ref, qw_ref, qb_ref,
                          out_ref, attn_ref):
    # Q projection; the 1/sqrt(H) scale is already folded into qw/qb.
    q = jnp.dot(span_ref[0], qw_ref[...],
                preferred_element_type=jnp.float32) + qb_ref[0]      # (TQ, Hp) f32

    # NT matmul: contract last dims of both operands -> no K transpose (no XLU).
    scores = lax.dot_general(
        q.astype(jnp.bfloat16), k_ref[0],
        dimension_numbers=(((1,), (1,)), ((), ())),
        preferred_element_type=jnp.float32,
    )                                                                # (TQ, Skp) f32

    # Additive mask bias (0 where valid, -1e9 where masked / padded keys).
    scores = scores + bias_ref[0]

    # Numerically-stable softmax in f32.  Exact reciprocal: the probabilities
    # are returned as atten_weight and must sum to 1.
    m = jnp.max(scores, axis=-1, keepdims=True)
    e = jnp.exp(scores - m)
    denom = jnp.sum(e, axis=-1, keepdims=True)
    p_attn = e * pl.reciprocal(denom, approx=False)

    attn_ref[0] = p_attn.astype(attn_ref.dtype)
    # TODO(synk): training-mode dropout on p_attn not implemented (eval => identity).
    out_ref[0] = jnp.dot(p_attn.astype(jnp.bfloat16), v_ref[0],
                         preferred_element_type=jnp.float32)


# ---------------------------------------------------------------------------
# Wrapper
# ---------------------------------------------------------------------------
@functools.partial(jax.jit, static_argnames=("attn_dtype",))
def span_attention(span_pool, sequence_output, sentence_mask, params,
                   attn_dtype=jnp.float32):
    """span_pool (B,Sq,H), sequence_output (B,Sk,H), sentence_mask (B,Sk).

    Set attn_dtype=jnp.bfloat16 to halve the attention-weight HBM writeback
    (the roofline stream on v5e/v6e) if downstream tolerates bf16 probabilities.
    """
    # TODO(synk): span_pool_masks (full (B,Sq,Sk) mask) path not wired; only the
    # sentence_mask broadcast path of the PyTorch module is implemented here.
    # TODO(synk): flash-style Sk tiling (running max/denominator) for very long
    # Sk; currently the full (Sk, H) K/V and (TQ, Sk) scores must fit VMEM.
    B, Sq, H = span_pool.shape
    _, Sk, _ = sequence_output.shape

    # ---- alignment: pad H / Sk to 128 lanes, Sq to the query tile ----------
    Hp = _round_up(H, 128)
    Skp = _round_up(Sk, 128)
    attn_bytes = jnp.dtype(attn_dtype).itemsize

    vmem_cap = _vmem_capacity_bytes()
    TQ, attn_vmem_est = _pick_q_tile(Sq, Skp, Hp, attn_bytes, vmem_cap)
    Sqp = _round_up(Sq, TQ)
    num_q = Sqp // TQ

    # ---- one-time host/XLA-side prep ---------------------------------------
    scale = 1.0 / math.sqrt(H)

    def pad_w(w):                       # (H, H) -> (Hp, Hp)
        return jnp.pad(w, ((0, Hp - H), (0, Hp - H)))

    def pad_b(b):                       # (H,) -> (1, Hp)
        return jnp.pad(b, (0, Hp - H)).reshape(1, Hp)

    # Pre-transposed weights (y = x @ W); softmax scale folded into Q.
    qwT = pad_w(params["qw"].T * scale).astype(jnp.bfloat16)
    qb = pad_b(params["qb"] * scale).astype(jnp.float32)
    kwT = pad_w(params["kw"].T).astype(jnp.bfloat16)
    kb = pad_b(params["kb"]).astype(jnp.float32)
    vwT = pad_w(params["vw"].T).astype(jnp.bfloat16)
    vb = pad_b(params["vb"]).astype(jnp.float32)

    span = jnp.pad(span_pool,
                   ((0, 0), (0, Sqp - Sq), (0, Hp - H))).astype(jnp.bfloat16)
    seq = jnp.pad(sequence_output,
                  ((0, 0), (0, Skp - Sk), (0, Hp - H))).astype(jnp.bfloat16)
    # Additive mask bias; padded key positions get -1e9 (masked out).
    mask = jnp.pad(sentence_mask.astype(jnp.float32), ((0, 0), (0, Skp - Sk)))
    mask_bias = ((mask - 1.0) * 1e9).reshape(B, 1, Skp)

    # ---- K / V projection pre-GEMM (packs batch into the M dimension) ------
    M = B * Skp
    TM = 512
    while M % TM != 0:
        TM //= 2
    seq2d = seq.reshape(M, Hp)

    # Grid-invariant blocks: single VMEM buffer (they are never re-DMA'd).
    proj_w_spec = pl.BlockSpec((Hp, Hp), lambda m: (0, 0),
                               pipeline_mode=pl.Buffered(1))
    proj_b_spec = pl.BlockSpec((1, Hp), lambda m: (0, 0),
                               pipeline_mode=pl.Buffered(1))

    proj_vmem = (2 * TM * Hp * 2 + 2 * 2 * TM * Hp * 2    # seq + K/V blocks
                 + 2 * (Hp * Hp * 2 + Hp * 4))            # weights/biases
    k2d, v2d = pl.pallas_call(
        kv_projection_kernel,
        out_shape=(jax.ShapeDtypeStruct((M, Hp), jnp.bfloat16),
                   jax.ShapeDtypeStruct((M, Hp), jnp.bfloat16)),
        grid_spec=pltpu.PrefetchScalarGridSpec(
            num_scalar_prefetch=0,
            grid=(M // TM,),
            in_specs=[
                pl.BlockSpec((TM, Hp), lambda m: (m, 0)),   # sequence rows
                proj_w_spec, proj_b_spec,                   # K weights
                proj_w_spec, proj_b_spec,                   # V weights
            ],
            out_specs=[
                pl.BlockSpec((TM, Hp), lambda m: (m, 0)),
                pl.BlockSpec((TM, Hp), lambda m: (m, 0)),
            ],
        ),
        compiler_params=pltpu.CompilerParams(
            dimension_semantics=("parallel",),
            vmem_limit_bytes=min(vmem_cap, max(2 * proj_vmem, 32 * 1024 * 1024)),
        ),
        cost_estimate=pl.CostEstimate(
            flops=2 * 2 * M * Hp * Hp,
            transcendentals=0,
            bytes_accessed=(M * Hp * 2 + 2 * (Hp * Hp * 2 + Hp * 4)
                            + 2 * M * Hp * 2),
        ),
    )(seq2d, kwT, kb, vwT, vb)

    k_proj = k2d.reshape(B, Skp, Hp)
    v_proj = v2d.reshape(B, Skp, Hp)

    # ---- fused Q-projection + attention kernel -----------------------------
    qw_spec = pl.BlockSpec((Hp, Hp), lambda b, t: (0, 0),
                           pipeline_mode=pl.Buffered(1))
    qb_spec = pl.BlockSpec((1, Hp), lambda b, t: (0, 0),
                           pipeline_mode=pl.Buffered(1))

    out, attn = pl.pallas_call(
        span_attention_kernel,
        out_shape=(
            jax.ShapeDtypeStruct((B, Sqp, Hp), jnp.float32),
            jax.ShapeDtypeStruct((B, Sqp, Skp), attn_dtype),
        ),
        grid_spec=pltpu.PrefetchScalarGridSpec(
            num_scalar_prefetch=0,
            grid=(B, num_q),
            in_specs=[
                pl.BlockSpec((1, TQ, Hp), lambda b, t: (b, t, 0)),    # span tile
                pl.BlockSpec((1, Skp, Hp), lambda b, t: (b, 0, 0)),   # K (per batch)
                pl.BlockSpec((1, Skp, Hp), lambda b, t: (b, 0, 0)),   # V (per batch)
                pl.BlockSpec((1, 1, Skp), lambda b, t: (b, 0, 0)),    # mask bias
                qw_spec, qb_spec,                                     # Q weights
            ],
            out_specs=[
                pl.BlockSpec((1, TQ, Hp), lambda b, t: (b, t, 0)),
                pl.BlockSpec((1, TQ, Skp), lambda b, t: (b, t, 0)),
            ],
        ),
        compiler_params=pltpu.CompilerParams(
            # No scratch carry across the q axis any more -> both axes parallel
            # (v7x: work shards across both TensorCores even when B is small).
            dimension_semantics=("parallel", "parallel"),
            vmem_limit_bytes=min(vmem_cap,
                                 max(2 * attn_vmem_est, 32 * 1024 * 1024)),
        ),
        cost_estimate=pl.CostEstimate(
            flops=2 * B * Sqp * Hp * Hp + 2 * 2 * B * Sqp * Skp * Hp,
            transcendentals=B * Sqp * Skp,
            bytes_accessed=(B * Sqp * Hp * 2 + 2 * B * Skp * Hp * 2
                            + B * Skp * 4 + Hp * Hp * 2 + Hp * 4
                            + B * Sqp * Hp * 4 + B * Sqp * Skp * attn_bytes),
        ),
    )(span, k_proj, v_proj, mask_bias, qwT, qb)

    # Strip padding.
    return out[:, :Sq, :H], attn[:, :Sq, :Sk]


# ---------------------------------------------------------------------------
# Parameter init + pure-JAX reference
# ---------------------------------------------------------------------------
def init_params(key, hidden_size):
    ks = jax.random.split(key, 6)
    bound = 1.0 / math.sqrt(hidden_size)

    def u(k, shape):
        return jax.random.uniform(k, shape, jnp.float32, -bound, bound)

    return {
        "qw": u(ks[0], (hidden_size, hidden_size)),
        "qb": u(ks[1], (hidden_size,)),
        "kw": u(ks[2], (hidden_size, hidden_size)),
        "kb": u(ks[3], (hidden_size,)),
        "vw": u(ks[4], (hidden_size, hidden_size)),
        "vb": u(ks[5], (hidden_size,)),
    }


def reference(span_pool, sequence_output, sentence_mask, params):
    q = span_pool @ params["qw"].T + params["qb"]
    k = sequence_output @ params["kw"].T + params["kb"]
    v = sequence_output @ params["vw"].T + params["vb"]
    scores = jnp.einsum("bqh,bkh->bqk", q, k) / math.sqrt(q.shape[-1])
    atten_mask = jnp.broadcast_to(sentence_mask[:, None, :], scores.shape)
    scores = jnp.where(atten_mask == 0, -1e9, scores)
    p = jax.nn.softmax(scores, axis=-1)
    return jnp.einsum("bqk,bkh->bqh", p, v), p


if __name__ == "__main__":
    B, Sq, Sk, H = 2, 8, 16, 32

    key = jax.random.PRNGKey(0)
    k_params, k_span, k_seq = jax.random.split(key, 3)

    params = init_params(k_params, H)
    span_pool = jax.random.normal(k_span, (B, Sq, H), jnp.float32)
    sequence_output = jax.random.normal(k_seq, (B, Sk, H), jnp.float32)
    # sentence_mask: (B, Sk), 1 = valid token, 0 = padding (last few masked).
    sentence_mask = (
        jnp.arange(Sk)[None, :] < jnp.array([[Sk], [Sk - 4]])
    ).astype(jnp.float32)

    out, attn_weight = span_attention(span_pool, sequence_output,
                                      sentence_mask, params)
    out = jax.block_until_ready(out)
    attn_weight = jax.block_until_ready(attn_weight)

    ref_out, ref_attn = reference(span_pool, sequence_output,
                                  sentence_mask, params)
    assert out.shape == ref_out.shape and attn_weight.shape == ref_attn.shape
    # Matmuls run with bf16 inputs (f32 accumulation); at very large H the bf16
    # input rounding can grow beyond these tolerances for outlier elements.
    assert jnp.allclose(out, ref_out, atol=5e-2, rtol=5e-2), "output mismatch"
    assert jnp.allclose(attn_weight, ref_attn, atol=2e-2, rtol=5e-2), "attn mismatch"

    print("KERNEL_OK")
</pallas_src>

<mosaic_0001>
module attributes {stable_mosaic.version = 11 : i64} {
  func.func @kv_projection_kernel(%arg0: i32, %arg1: memref<256x128xbf16, #tpu.memory_space<vmem>>, %arg2: memref<128x128xbf16, #tpu.memory_space<vmem>>, %arg3: memref<1x128xf32, #tpu.memory_space<vmem>>, %arg4: memref<128x128xbf16, #tpu.memory_space<vmem>>, %arg5: memref<1x128xf32, #tpu.memory_space<vmem>>, %arg6: memref<256x128xbf16, #tpu.memory_space<vmem>>, %arg7: memref<256x128xbf16, #tpu.memory_space<vmem>>) attributes {dimension_semantics = [#tpu.dimension_semantics<parallel>], iteration_bounds = array<i64: 1>, scalar_prefetch = 0 : i64, scratch_operands = 0 : i64, tpu.core_type = #tpu.core_type<tc>, window_params = [{transform_indices = @transform_0, window_bounds = array<i64: 256, 128>}, {pipeline_mode = #tpu.pipeline_mode<synchronous>, transform_indices = @transform_1, window_bounds = array<i64: 128, 128>}, {pipeline_mode = #tpu.pipeline_mode<synchronous>, transform_indices = @transform_2, window_bounds = array<i64: 1, 128>}, {pipeline_mode = #tpu.pipeline_mode<synchronous>, transform_indices = @transform_3, window_bounds = array<i64: 128, 128>}, {pipeline_mode = #tpu.pipeline_mode<synchronous>, transform_indices = @transform_4, window_bounds = array<i64: 1, 128>}, {transform_indices = @transform_5, window_bounds = array<i64: 256, 128>}, {transform_indices = @transform_6, window_bounds = array<i64: 256, 128>}]} {
    %c0 = arith.constant 0 : index
    %c0_0 = arith.constant 0 : index
    %0 = vector.load %arg1[%c0, %c0_0] : memref<256x128xbf16, #tpu.memory_space<vmem>>, vector<256x128xbf16>
    %c0_1 = arith.constant 0 : index
    %c0_2 = arith.constant 0 : index
    %1 = vector.load %arg2[%c0_1, %c0_2] : memref<128x128xbf16, #tpu.memory_space<vmem>>, vector<128x128xbf16>
    %cst = arith.constant dense<0.000000e+00> : vector<256x128xf32>
    %2 = tpu.matmul %0, %1, %cst {dimension_numbers = #tpu.dot_dimension_numbers<[1], [0], [0], [1], [0, 0, 1, 1], [], []>} : vector<256x128xbf16>, vector<128x128xbf16>, vector<256x128xf32> -> vector<256x128xf32>
    %c0_3 = arith.constant 0 : index
    %c0_4 = arith.constant 0 : index
    %3 = vector.load %arg3[%c0_3, %c0_4] : memref<1x128xf32, #tpu.memory_space<vmem>>, vector<1x128xf32>
    %4 = vector.shape_cast %3 : vector<1x128xf32> to vector<128xf32>
    %5 = vector.shape_cast %4 : vector<128xf32> to vector<1x128xf32>
    %6 = vector.broadcast %5 : vector<1x128xf32> to vector<256x128xf32>
    %7 = arith.addf %2, %6 : vector<256x128xf32>
    %c0_5 = arith.constant 0 : index
    %c0_6 = arith.constant 0 : index
    %8 = vector.load %arg4[%c0_5, %c0_6] : memref<128x128xbf16, #tpu.memory_space<vmem>>, vector<128x128xbf16>
    %cst_7 = arith.constant dense<0.000000e+00> : vector<256x128xf32>
    %9 = tpu.matmul %0, %8, %cst_7 {dimension_numbers = #tpu.dot_dimension_numbers<[1], [0], [0], [1], [0, 0, 1, 1], [], []>} : vector<256x128xbf16>, vector<128x128xbf16>, vector<256x128xf32> -> vector<256x128xf32>
    %c0_8 = arith.constant 0 : index
    %c0_9 = arith.constant 0 : index
    %10 = vector.load %arg5[%c0_8, %c0_9] : memref<1x128xf32, #tpu.memory_space<vmem>>, vector<1x128xf32>
    %11 = vector.shape_cast %10 : vector<1x128xf32> to vector<128xf32>
    %12 = vector.shape_cast %11 : vector<128xf32> to vector<1x128xf32>
    %13 = vector.broadcast %12 : vector<1x128xf32> to vector<256x128xf32>
    %14 = arith.addf %9, %13 : vector<256x128xf32>
    %15 = arith.truncf %7 : vector<256x128xf32> to vector<256x128xbf16>
    %c0_10 = arith.constant 0 : index
    %c0_11 = arith.constant 0 : index
    %16 = vector.load %arg6[%c0_10, %c0_11] : memref<256x128xbf16, #tpu.memory_space<vmem>>, vector<256x128xbf16>
    tpu.vector_store %arg6[%c0_10, %c0_11], %15 {strides = array<i32>} : memref<256x128xbf16, #tpu.memory_space<vmem>>, vector<256x128xbf16>,
    %17 = arith.truncf %14 : vector<256x128xf32> to vector<256x128xbf16>
    %c0_12 = arith.constant 0 : index
    %c0_13 = arith.constant 0 : index
    %18 = vector.load %arg7[%c0_12, %c0_13] : memref<256x128xbf16, #tpu.memory_space<vmem>>, vector<256x128xbf16>
    tpu.vector_store %arg7[%c0_12, %c0_13], %17 {strides = array<i32>} : memref<256x128xbf16, #tpu.memory_space<vmem>>, vector<256x128xbf16>,
    return
  }
  func.func @transform_0(%arg0: i32) -> (i32, i32) {
    %c0_i32 = arith.constant 0 : i32
    %c0_i32_0 = arith.constant 0 : i32
    return %arg0, %c0_i32 : i32, i32
  }
  func.func @transform_1(%arg0: i32) -> (i32, i32) {
    %c0_i32 = arith.constant 0 : i32
    %c0_i32_0 = arith.constant 0 : i32
    %c0_i32_1 = arith.constant 0 : i32
    return %c0_i32, %c0_i32_0 : i32, i32
  }
  func.func @transform_2(%arg0: i32) -> (i32, i32) {
    %c0_i32 = arith.constant 0 : i32
    %c0_i32_0 = arith.constant 0 : i32
    %c0_i32_1 = arith.constant 0 : i32
    return %c0_i32, %c0_i32_0 : i32, i32
  }
  func.func @transform_3(%arg0: i32) -> (i32, i32) {
    %c0_i32 = arith.constant 0 : i32
    %c0_i32_0 = arith.constant 0 : i32
    %c0_i32_1 = arith.constant 0 : i32
    return %c0_i32, %c0_i32_0 : i32, i32
  }
  func.func @transform_4(%arg0: i32) -> (i32, i32) {
    %c0_i32 = arith.constant 0 : i32
    %c0_i32_0 = arith.constant 0 : i32
    %c0_i32_1 = arith.constant 0 : i32
    return %c0_i32, %c0_i32_0 : i32, i32
  }
  func.func @transform_5(%arg0: i32) -> (i32, i32) {
    %c0_i32 = arith.constant 0 : i32
    %c0_i32_0 = arith.constant 0 : i32
    return %arg0, %c0_i32 : i32, i32
  }
  func.func @transform_6(%arg0: i32) -> (i32, i32) {
    %c0_i32 = arith.constant 0 : i32
    %c0_i32_0 = arith.constant 0 : i32
    return %arg0, %c0_i32 : i32, i32
  }
}

module attributes {stable_mosaic.version = 11 : i64} {
  func.func @span_attention_kernel(%arg0: i32, %arg1: i32, %arg2: memref<1x16x128xbf16, #tpu.memory_space<vmem>>, %arg3: memref<1x128x128xbf16, #tpu.memory_space<vmem>>, %arg4: memref<1x128x128xbf16, #tpu.memory_space<vmem>>, %arg5: memref<1x1x128xf32, #tpu.memory_space<vmem>>, %arg6: memref<128x128xbf16, #tpu.memory_space<vmem>>, %arg7: memref<1x128xf32, #tpu.memory_space<vmem>>, %arg8: memref<1x16x128xf32, #tpu.memory_space<vmem>>, %arg9: memref<1x16x128xf32, #tpu.memory_space<vmem>>) attributes {dimension_semantics = [#tpu.dimension_semantics<parallel>, #tpu.dimension_semantics<parallel>], iteration_bounds = array<i64: 2, 1>, scalar_prefetch = 0 : i64, scratch_operands = 0 : i64, tpu.core_type = #tpu.core_type<tc>, window_params = [{transform_indices = @transform_0, window_bounds = array<i64: 1, 16, 128>}, {transform_indices = @transform_1, window_bounds = array<i64: 1, 128, 128>}, {transform_indices = @transform_2, window_bounds = array<i64: 1, 128, 128>}, {transform_indices = @transform_3, window_bounds = array<i64: 1, 1, 128>}, {pipeline_mode = #tpu.pipeline_mode<synchronous>, transform_indices = @transform_4, window_bounds = array<i64: 128, 128>}, {pipeline_mode = #tpu.pipeline_mode<synchronous>, transform_indices = @transform_5, window_bounds = array<i64: 1, 128>}, {transform_indices = @transform_6, window_bounds = array<i64: 1, 16, 128>}, {transform_indices = @transform_7, window_bounds = array<i64: 1, 16, 128>}]} {
    %c0 = arith.constant 0 : index
    %c0_0 = arith.constant 0 : index
    %c0_1 = arith.constant 0 : index
    %0 = vector.load %arg2[%c0, %c0_0, %c0_1] : memref<1x16x128xbf16, #tpu.memory_space<vmem>>, vector<1x16x128xbf16>
    %1 = vector.shape_cast %0 : vector<1x16x128xbf16> to vector<16x128xbf16>
    %c0_2 = arith.constant 0 : index
    %c0_3 = arith.constant 0 : index
    %2 = vector.load %arg6[%c0_2, %c0_3] : memref<128x128xbf16, #tpu.memory_space<vmem>>, vector<128x128xbf16>
    %cst = arith.constant dense<0.000000e+00> : vector<16x128xf32>
    %3 = tpu.matmul %1, %2, %cst {dimension_numbers = #tpu.dot_dimension_numbers<[1], [0], [0], [1], [0, 0, 1, 1], [], []>} : vector<16x128xbf16>, vector<128x128xbf16>, vector<16x128xf32> -> vector<16x128xf32>
    %c0_4 = arith.constant 0 : index
    %c0_5 = arith.constant 0 : index
    %4 = vector.load %arg7[%c0_4, %c0_5] : memref<1x128xf32, #tpu.memory_space<vmem>>, vector<1x128xf32>
    %5 = vector.shape_cast %4 : vector<1x128xf32> to vector<128xf32>
    %6 = vector.shape_cast %5 : vector<128xf32> to vector<1x128xf32>
    %7 = vector.broadcast %6 : vector<1x128xf32> to vector<16x128xf32>
    %8 = arith.addf %3, %7 : vector<16x128xf32>
    %9 = arith.truncf %8 : vector<16x128xf32> to vector<16x128xbf16>
    %c0_6 = arith.constant 0 : index
    %c0_7 = arith.constant 0 : index
    %c0_8 = arith.constant 0 : index
    %10 = vector.load %arg3[%c0_6, %c0_7, %c0_8] : memref<1x128x128xbf16, #tpu.memory_space<vmem>>, vector<1x128x128xbf16>
    %11 = vector.shape_cast %10 : vector<1x128x128xbf16> to vector<128x128xbf16>
    %cst_9 = arith.constant dense<0.000000e+00> : vector<16x128xf32>
    %12 = tpu.matmul %9, %11, %cst_9 {dimension_numbers = #tpu.dot_dimension_numbers<[1], [1], [0], [0], [0, 0, 1, 0], [], []>} : vector<16x128xbf16>, vector<128x128xbf16>, vector<16x128xf32> -> vector<16x128xf32>
    %c0_10 = arith.constant 0 : index
    %c0_11 = arith.constant 0 : index
    %c0_12 = arith.constant 0 : index
    %13 = vector.load %arg5[%c0_10, %c0_11, %c0_12] : memref<1x1x128xf32, #tpu.memory_space<vmem>>, vector<1x1x128xf32>
    %14 = vector.shape_cast %13 : vector<1x1x128xf32> to vector<1x128xf32>
    %15 = vector.broadcast %14 : vector<1x128xf32> to vector<16x128xf32>
    %16 = arith.addf %12, %15 : vector<16x128xf32>
    %cst_13 = arith.constant dense<0xFF800000> : vector<16xf32>
    %17 = vector.multi_reduction <maximumf>, %16, %cst_13 [1] : vector<16x128xf32> to vector<16xf32>
    %18 = vector.shape_cast %17 : vector<16xf32> to vector<16x1xf32>
    %19 = vector.broadcast %18 : vector<16x1xf32> to vector<16x128xf32>
    %20 = arith.subf %16, %19 : vector<16x128xf32>
    %21 = math.exp %20 : vector<16x128xf32>
    %cst_14 = arith.constant dense<0.000000e+00> : vector<16xf32>
    %22 = vector.multi_reduction <add>, %21, %cst_14 [1] : vector<16x128xf32> to vector<16xf32>
    %23 = vector.shape_cast %22 : vector<16xf32> to vector<16x1xf32>
    %24 = tpu.reciprocal %23 : vector<16x1xf32> -> vector<16x1xf32>
    %25 = vector.broadcast %24 : vector<16x1xf32> to vector<16x128xf32>
    %26 = arith.mulf %21, %25 : vector<16x128xf32>
    %c0_15 = arith.constant 0 : index
    %c0_16 = arith.constant 0 : index
    %c0_17 = arith.constant 0 : index
    %27 = vector.load %arg9[%c0_15, %c0_16, %c0_17] : memref<1x16x128xf32, #tpu.memory_space<vmem>>, vector<1x16x128xf32>
    %28 = vector.shape_cast %27 : vector<1x16x128xf32> to vector<16x128xf32>
    %29 = vector.shape_cast %26 : vector<16x128xf32> to vector<1x16x128xf32>
    tpu.vector_store %arg9[%c0_15, %c0_16, %c0_17], %29 {strides = array<i32>} : memref<1x16x128xf32, #tpu.memory_space<vmem>>, vector<1x16x128xf32>,
    %30 = arith.truncf %26 : vector<16x128xf32> to vector<16x128xbf16>
    %c0_18 = arith.constant 0 : index
    %c0_19 = arith.constant 0 : index
    %c0_20 = arith.constant 0 : index
    %31 = vector.load %arg4[%c0_18, %c0_19, %c0_20] : memref<1x128x128xbf16, #tpu.memory_space<vmem>>, vector<1x128x128xbf16>
    %32 = vector.shape_cast %31 : vector<1x128x128xbf16> to vector<128x128xbf16>
    %cst_21 = arith.constant dense<0.000000e+00> : vector<16x128xf32>
    %33 = tpu.matmul %30, %32, %cst_21 {dimension_numbers = #tpu.dot_dimension_numbers<[1], [0], [0], [1], [0, 0, 1, 1], [], []>} : vector<16x128xbf16>, vector<128x128xbf16>, vector<16x128xf32> -> vector<16x128xf32>
    %c0_22 = arith.constant 0 : index
    %c0_23 = arith.constant 0 : index
    %c0_24 = arith.constant 0 : index
    %34 = vector.load %arg8[%c0_22, %c0_23, %c0_24] : memref<1x16x128xf32, #tpu.memory_space<vmem>>, vector<1x16x128xf32>
    %35 = vector.shape_cast %34 : vector<1x16x128xf32> to vector<16x128xf32>
    %36 = vector.shape_cast %33 : vector<16x128xf32> to vector<1x16x128xf32>
    tpu.vector_store %arg8[%c0_22, %c0_23, %c0_24], %36 {strides = array<i32>} : memref<1x16x128xf32, #tpu.memory_space<vmem>>, vector<1x16x128xf32>,
    return
  }
  func.func @transform_0(%arg0: i32, %arg1: i32) -> (i32, i32, i32) {
    %c0_i32 = arith.constant 0 : i32
    %c0_i32_0 = arith.constant 0 : i32
    return %arg0, %arg1, %c0_i32 : i32, i32, i32
  }
  func.func @transform_1(%arg0: i32, %arg1: i32) -> (i32, i32, i32) {
    %c0_i32 = arith.constant 0 : i32
    %c0_i32_0 = arith.constant 0 : i32
    %c0_i32_1 = arith.constant 0 : i32
    return %arg0, %c0_i32, %c0_i32_0 : i32, i32, i32
  }
  func.func @transform_2(%arg0: i32, %arg1: i32) -> (i32, i32, i32) {
    %c0_i32 = arith.constant 0 : i32
    %c0_i32_0 = arith.constant 0 : i32
    %c0_i32_1 = arith.constant 0 : i32
    return %arg0, %c0_i32, %c0_i32_0 : i32, i32, i32
  }
  func.func @transform_3(%arg0: i32, %arg1: i32) -> (i32, i32, i32) {
    %c0_i32 = arith.constant 0 : i32
    %c0_i32_0 = arith.constant 0 : i32
    %c0_i32_1 = arith.constant 0 : i32
    return %arg0, %c0_i32, %c0_i32_0 : i32, i32, i32
  }
  func.func @transform_4(%arg0: i32, %arg1: i32) -> (i32, i32) {
    %c0_i32 = arith.constant 0 : i32
    %c0_i32_0 = arith.constant 0 : i32
    %c0_i32_1 = arith.constant 0 : i32
    return %c0_i32, %c0_i32_0 : i32, i32
  }
  func.func @transform_5(%arg0: i32, %arg1: i32) -> (i32, i32) {
    %c0_i32 = arith.constant 0 : i32
    %c0_i32_0 = arith.constant 0 : i32
    %c0_i32_1 = arith.constant 0 : i32
    return %c0_i32, %c0_i32_0 : i32, i32
  }
  func.func @transform_6(%arg0: i32, %arg1: i32) -> (i32, i32, i32) {
    %c0_i32 = arith.constant 0 : i32
    %c0_i32_0 = arith.constant 0 : i32
    return %arg0, %arg1, %c0_i32 : i32, i32, i32
  }
  func.func @transform_7(%arg0: i32, %arg1: i32) -> (i32, i32, i32) {
    %c0_i32 = arith.constant 0 : i32
    %c0_i32_0 = arith.constant 0 : i32
    return %arg0, %arg1, %c0_i32 : i32, i32, i32
  }
}

</mosaic_0001>

<llo_original>
// kernel: span_attention.3
$region0: #{span_attention.3}
  #allocation0 [shape = 'u32[]', space=smem, size = 0x4, offset = 0x4, fixed_abs, tag = 'smem constant byte address 0x4 - core index']
  #allocation1 [shape = 'u32[144,128]{1,0:T(1,128)}', space=vmem, size = 0x12000, scoped, tag = 'internal scratch']
  %s0 = inlined_call_operand.vmem [shape: bf16[2,16,128], index: 0, kind: input, shape index: {}]
  %s1 = inlined_call_operand.vmem [shape: bf16[2,128,128], index: 1, kind: input, shape index: {}]
  %s2 = inlined_call_operand.vmem [shape: bf16[2,128,128], index: 2, kind: input, shape index: {}]
  %s3 = inlined_call_operand.vmem [shape: f32[2,1,128], index: 3, kind: input, shape index: {}]
  %s4 = inlined_call_operand.vmem [shape: bf16[128,128], index: 4, kind: input, shape index: {}]
  %s5 = inlined_call_operand.vmem [shape: f32[1,128], index: 5, kind: input, shape index: {}]
  %s6 = inlined_call_operand.vmem [shape: f32[2,16,128], index: 6, kind: output, shape index: {0}]
  %s7 = inlined_call_operand.vmem [shape: f32[2,16,128], index: 7, kind: output, shape index: {1}]
  %8 = xla_tuple %s6, %s7
  %s9 = sld [smem:[#allocation0]]
  $region65: #{span_attention.3} parent=0
    _
  %s11 = ssub.s32 1, %s9
  %s12 = scalar_select 0, %s11, %s9
  loop: start=0, step=1, limit=4
  $region2: #{span_attention.3} parent=0 // loop_pre_header
    _
  $region3: #{span_attention.3} parent=0 // loop_header
    %s14 = sphi 0, %s18
    %p15 = scmp.ge.s32.totalorder %s14, 4
    %s21 = sphi 0, %s33
    %s22 = sphi 0, %s29
    %s23 = sphi 0, %s21
    %s24 = sphi 0, %s22
    %s25 = sphi 0, %s23
    %s26 = sphi 0, %s24
    %s38 = sphi 0, %s40
    %s41 = sphi 0, %s38
    %s42 = sphi 0, %s41
    %s58 = sphi 0, %s42
    %s64 = sphi 0, %s66
    %s67 = sphi 0, %s64
    %s68 = sphi 0, %s67
    %s84 = sphi 0, %s68
    %s90 = sphi 0, %s92
    %s93 = sphi 0, %s90
    %s94 = sphi 0, %s93
    %s110 = sphi 0, %s94
    %s116 = sphi 0, %s118
    %s119 = sphi 0, %s116
    %s120 = sphi 0, %s119
    %s136 = sphi 0, %s120
    %s140 = sphi 0, %s140
    %s142 = sphi 0, %s140
    %s143 = sphi 0, %s142
    %s157 = sphi 0, %s143
    %s161 = sphi 0, %s161
    %s163 = sphi 0, %s161
    %s164 = sphi 0, %s163
    %s178 = sphi 0, %s164
    %s186 = sphi 0, %s188
    %s189 = sphi 0, %s186
    %s190 = sphi 0, %s189
    %s206 = sphi 0, %s190
    %s214 = sphi 0, %s216
    %s217 = sphi 0, %s214
    %s218 = sphi 0, %s217
    %s234 = sphi 0, %s218
  $region4: #{span_attention.3} parent=0 // loop_header_branch
    %17 = sbr.rel (%p15) target = $region8
  $region5: #{span_attention.3} parent=0 // loop_body
    %s19 = ssub.s32 %s14, 1
    %s20 = ssub.s32 %s14, 2
    %s27 = sadd.s32 1, %s22
    %p28 = scmp.ge.s32.totalorder %s27, 1
    %s29 = scalar_select %p28, 0, %s27
    %s30 = sadd.s32 1, %s21
    %s31 = scalar_select %p28, %s30, %s21
    %p32 = scmp.ge.s32.totalorder %s31, 2
    %s33 = scalar_select %p32, 0, %s31
    %s34 = ssub.s32 %s21, %s33
    %s35 = ssub.s32 %s22, %s29
    %s36 = sor.u32 %s34, %s35
    %p37 = scmp.eq.s32.totalorder %s36, 0
    %s39 = sadd.s32 %s38, 1
    %s40 = scalar_select %p37, %s38, %s39
    %p43 = pneg %p37
    %p44 = scmp.eq.s32.totalorder %s14, 1
    %p45 = por %p43, %p44
    %p46 = scmp.ne.s32.totalorder %s38, %s41
    %p47 = scmp.eq.s32.totalorder %s14, 0
    %p48 = por %p46, %p47
    %p49 = scmp.ne.s32.totalorder %s38, %s41
    %p50 = scmp.eq.s32.totalorder %s19, 1
    %p51 = por %p49, %p50
    %p52 = scmp.ne.s32.totalorder %s41, %s42
    %p53 = scmp.eq.s32.totalorder %s19, 0
    %p54 = por %p52, %p53
    %p55 = scmp.ne.s32.totalorder %s41, %s42
    %p56 = scmp.eq.s32.totalorder %s20, 1
    %p57 = por %p55, %p56
    %p59 = scmp.ne.s32.totalorder %s42, %s58
    %p60 = scmp.eq.s32.totalorder %s20, 0
    %p61 = por %p59, %p60
    %s62 = ssub.s32 %s21, %s33
    %p63 = scmp.eq.s32.totalorder %s62, 0
    %s65 = sadd.s32 %s64, 1
    %s66 = scalar_select %p63, %s64, %s65
    %p69 = pneg %p63
    %p70 = scmp.eq.s32.totalorder %s14, 1
    %p71 = por %p69, %p70
    %p72 = scmp.ne.s32.totalorder %s64, %s67
    %p73 = scmp.eq.s32.totalorder %s14, 0
    %p74 = por %p72, %p73
    %p75 = scmp.ne.s32.totalorder %s64, %s67
    %p76 = scmp.eq.s32.totalorder %s19, 1
    %p77 = por %p75, %p76
    %p78 = scmp.ne.s32.totalorder %s67, %s68
    %p79 = scmp.eq.s32.totalorder %s19, 0
    %p80 = por %p78, %p79
    %p81 = scmp.ne.s32.totalorder %s67, %s68
    %p82 = scmp.eq.s32.totalorder %s20, 1
    %p83 = por %p81, %p82
    %p85 = scmp.ne.s32.totalorder %s68, %s84
    %p86 = scmp.eq.s32.totalorder %s20, 0
    %p87 = por %p85, %p86
    %s88 = ssub.s32 %s21, %s33
    %p89 = scmp.eq.s32.totalorder %s88, 0
    %s91 = sadd.s32 %s90, 1
    %s92 = scalar_select %p89, %s90, %s91
    %p95 = pneg %p89
    %p96 = scmp.eq.s32.totalorder %s14, 1
    %p97 = por %p95, %p96
    %p98 = scmp.ne.s32.totalorder %s90, %s93
    %p99 = scmp.eq.s32.totalorder %s14, 0
    %p100 = por %p98, %p99
    %p101 = scmp.ne.s32.totalorder %s90, %s93
    %p102 = scmp.eq.s32.totalorder %s19, 1
    %p103 = por %p101, %p102
    %p104 = scmp.ne.s32.totalorder %s93, %s94
    %p105 = scmp.eq.s32.totalorder %s19, 0
    %p106 = por %p104, %p105
    %p107 = scmp.ne.s32.totalorder %s93, %s94
    %p108 = scmp.eq.s32.totalorder %s20, 1
    %p109 = por %p107, %p108
    %p111 = scmp.ne.s32.totalorder %s94, %s110
    %p112 = scmp.eq.s32.totalorder %s20, 0
    %p113 = por %p111, %p112
    %s114 = ssub.s32 %s21, %s33
    %p115 = scmp.eq.s32.totalorder %s114, 0
    %s117 = sadd.s32 %s116, 1
    %s118 = scalar_select %p115, %s116, %s117
    %p121 = pneg %p115
    %p122 = scmp.eq.s32.totalorder %s14, 1
    %p123 = por %p121, %p122
    %p124 = scmp.ne.s32.totalorder %s116, %s119
    %p125 = scmp.eq.s32.totalorder %s14, 0
    %p126 = por %p124, %p125
    %p127 = scmp.ne.s32.totalorder %s116, %s119
    %p128 = scmp.eq.s32.totalorder %s19, 1
    %p129 = por %p127, %p128
    %p130 = scmp.ne.s32.totalorder %s119, %s120
    %p131 = scmp.eq.s32.totalorder %s19, 0
    %p132 = por %p130, %p131
    %p133 = scmp.ne.s32.totalorder %s119, %s120
    %p134 = scmp.eq.s32.totalorder %s20, 1
    %p135 = por %p133, %p134
    %p137 = scmp.ne.s32.totalorder %s120, %s136
    %p138 = scmp.eq.s32.totalorder %s20, 0
    %p139 = por %p137, %p138
    %s141 = sadd.s32 %s140, 1
    %p144 = scmp.eq.s32.totalorder %s14, 1
    %p145 = scmp.ne.s32.totalorder %s140, %s142
    %p146 = scmp.eq.s32.totalorder %s14, 0
    %p147 = por %p145, %p146
    %p148 = scmp.ne.s32.totalorder %s140, %s142
    %p149 = scmp.eq.s32.totalorder %s19, 1
    %p150 = por %p148, %p149
    %p151 = scmp.ne.s32.totalorder %s142, %s143
    %p152 = scmp.eq.s32.totalorder %s19, 0
    %p153 = por %p151, %p152
    %p154 = scmp.ne.s32.totalorder %s142, %s143
    %p155 = scmp.eq.s32.totalorder %s20, 1
    %p156 = por %p154, %p155
    %p158 = scmp.ne.s32.totalorder %s143, %s157
    %p159 = scmp.eq.s32.totalorder %s20, 0
    %p160 = por %p158, %p159
    %s162 = sadd.s32 %s161, 1
    %p165 = scmp.eq.s32.totalorder %s14, 1
    %p166 = scmp.ne.s32.totalorder %s161, %s163
    %p167 = scmp.eq.s32.totalorder %s14, 0
    %p168 = por %p166, %p167
    %p169 = scmp.ne.s32.totalorder %s161, %s163
    %p170 = scmp.eq.s32.totalorder %s19, 1
    %p171 = por %p169, %p170
    %p172 = scmp.ne.s32.totalorder %s163, %s164
    %p173 = scmp.eq.s32.totalorder %s19, 0
    %p174 = por %p172, %p173
    %p175 = scmp.ne.s32.totalorder %s163, %s164
    %p176 = scmp.eq.s32.totalorder %s20, 1
    %p177 = por %p175, %p176
    %p179 = scmp.ne.s32.totalorder %s164, %s178
    %p180 = scmp.eq.s32.totalorder %s20, 0
    %p181 = por %p179, %p180
    %s182 = ssub.s32 %s21, %s33
    %s183 = ssub.s32 %s22, %s29
    %s184 = sor.u32 %s182, %s183
    %p185 = scmp.eq.s32.totalorder %s184, 0
    %s187 = sadd.s32 %s186, 1
    %s188 = scalar_select %p185, %s186, %s187
    %p191 = pneg %p185
    %p192 = scmp.eq.s32.totalorder %s14, 1
    %p193 = por %p191, %p192
    %p194 = scmp.ne.s32.totalorder %s186, %s189
    %p195 = scmp.eq.s32.totalorder %s14, 0
    %p196 = por %p194, %p195
    %p197 = scmp.ne.s32.totalorder %s186, %s189
    %p198 = scmp.eq.s32.totalorder %s19, 1
    %p199 = por %p197, %p198
    %p200 = scmp.ne.s32.totalorder %s189, %s190
    %p201 = scmp.eq.s32.totalorder %s19, 0
    %p202 = por %p200, %p201
    %p203 = scmp.ne.s32.totalorder %s189, %s190
    %p204 = scmp.eq.s32.totalorder %s20, 1
    %p205 = por %p203, %p204
    %p207 = scmp.ne.s32.totalorder %s190, %s206
    %p208 = scmp.eq.s32.totalorder %s20, 0
    %p209 = por %p207, %p208
    %s210 = ssub.s32 %s21, %s33
    %s211 = ssub.s32 %s22, %s29
    %s212 = sor.u32 %s210, %s211
    %p213 = scmp.eq.s32.totalorder %s212, 0
    %s215 = sadd.s32 %s214, 1
    %s216 = scalar_select %p213, %s214, %s215
    %p219 = pneg %p213
    %p220 = scmp.eq.s32.totalorder %s14, 1
    %p221 = por %p219, %p220
    %p222 = scmp.ne.s32.totalorder %s214, %s217
    %p223 = scmp.eq.s32.totalorder %s14, 0
    %p224 = por %p222, %p223
    %p225 = scmp.ne.s32.totalorder %s214, %s217
    %p226 = scmp.eq.s32.totalorder %s19, 1
    %p227 = por %p225, %p226
    %p228 = scmp.ne.s32.totalorder %s217, %s218
    %p229 = scmp.eq.s32.totalorder %s19, 0
    %p230 = por %p228, %p229
    %p231 = scmp.ne.s32.totalorder %s217, %s218
    %p232 = scmp.eq.s32.totalorder %s20, 1
    %p233 = por %p231, %p232
    %p235 = scmp.ne.s32.totalorder %s218, %s234
    %p236 = scmp.eq.s32.totalorder %s20, 0
    %p237 = por %p235, %p236
    %p238 = scmp.le.s32.totalorder 1, %s14
    %p239 = scmp.lt.s32.totalorder %s14, 3
    %p240 = pnand %p238, %p239
    %p241 = pneg %p240
    // Predicated region
    $region9: #{span_attention.3} parent=5 // pred_check
      _
    $region10: #{span_attention.3} parent=5 // pred_check_branch
      %243 = sbr.rel (%p240) target = $region12
    $region11: #{span_attention.3} parent=5 // pred_region
      %s244 = ssub.s32 %s14, 1
      // Predicated region
      $region13: #{span_attention.3} parent=11 // pred_check
        %p245 = pneg %p153
      $region14: #{span_attention.3} parent=11 // pred_check_branch
        %247 = sbr.rel (%p245) target = $region16
      $region15: #{span_attention.3} parent=11 // pred_region
        _
      $region16: #{span_attention.3} parent=11 // pred_fallthru
        _
      // Predicated region
      $region17: #{span_attention.3} parent=11 // pred_check
        %p248 = pneg %p174
      $region18: #{span_attention.3} parent=11 // pred_check_branch
        %250 = sbr.rel (%p248) target = $region20
      $region19: #{span_attention.3} parent=11 // pred_region
        _
      $region20: #{span_attention.3} parent=11 // pred_fallthru
        _
    $region12: #{span_attention.3} parent=5 // pred_fallthru
      _
    %p251 = scmp.lt.s32.totalorder %s14, 2
    // Predicated region
    $region21: #{span_attention.3} parent=5 // pred_check
      %p252 = pneg %p251
    $region22: #{span_attention.3} parent=5 // pred_check_branch
      %254 = sbr.rel (%p252) target = $region24
    $region23: #{span_attention.3} parent=5 // pred_region
      // Predicated region
      $region25: #{span_attention.3} parent=23 // pred_check
        %p255 = pneg %p48
      $region26: #{span_attention.3} parent=23 // pred_check_branch
        %257 = sbr.rel (%p255) target = $region28
      $region27: #{span_attention.3} parent=23 // pred_region
        %s258 = smul.u32 2, %s22
        %p259 = scmp.lt.s32.totalorder %s21, 1
        %s260 = scalar_select %p259, %s21, 1
        %p261 = scmp.lt.s32.totalorder %s258, 1
        %s262 = scalar_select %p261, %s258, 1
        %s263 = smul.addr %s260, 2
        %s264 = sadd.s32 %s262, %s263
        %s265 = smul.addr %s264, 4
        %s266 = scalar_lea.vmem %s0, %s265
        %s267 = smul.u32 2, %s22
      $region28: #{span_attention.3} parent=23 // pred_fallthru
        _
      // Predicated region
      $region29: #{span_attention.3} parent=23 // pred_check
        %p268 = pneg %p74
      $region30: #{span_attention.3} parent=23 // pred_check_branch
        %270 = sbr.rel (%p268) target = $region32
      $region31: #{span_attention.3} parent=23 // pred_region
        %p271 = scmp.lt.s32.totalorder %s21, 1
        %s272 = scalar_select %p271, %s21, 1
        %s273 = smul.addr %s272, 16
        %s274 = smul.addr %s273, 4
        %s275 = scalar_lea.vmem %s1, %s274
      $region32: #{span_attention.3} parent=23 // pred_fallthru
        _
      // Predicated region
      $region33: #{span_attention.3} parent=23 // pred_check
        %p276 = pneg %p100
      $region34: #{span_attention.3} parent=23 // pred_check_branch
        %278 = sbr.rel (%p276) target = $region36
      $region35: #{span_attention.3} parent=23 // pred_region
        %p279 = scmp.lt.s32.totalorder %s21, 1
        %s280 = scalar_select %p279, %s21, 1
        %s281 = smul.addr %s280, 16
        %s282 = smul.addr %s281, 4
        %s283 = scalar_lea.vmem %s2, %s282
      $region36: #{span_attention.3} parent=23 // pred_fallthru
        _
      // Predicated region
      $region37: #{span_attention.3} parent=23 // pred_check
        %p284 = pneg %p126
      $region38: #{span_attention.3} parent=23 // pred_check_branch
        %286 = sbr.rel (%p284) target = $region40
      $region39: #{span_attention.3} parent=23 // pred_region
        %p287 = scmp.lt.s32.totalorder %s21, 1
        %s288 = scalar_select %p287, %s21, 1
        %s289 = scalar_lea.vmem %s3, %s288
      $region40: #{span_attention.3} parent=23 // pred_fallthru
        _
    $region24: #{span_attention.3} parent=5 // pred_fallthru
      _
    %p290 = scmp.le.s32.totalorder 1, %s14
    %p291 = scmp.lt.s32.totalorder %s14, 3
    %p292 = pnand %p290, %p291
    %p293 = pneg %p292
    // Predicated region
    $region41: #{span_attention.3} parent=5 // pred_check
      _
    $region42: #{span_attention.3} parent=5 // pred_check_branch
      %295 = sbr.rel (%p292) target = $region44
    $region43: #{span_attention.3} parent=5 // pred_region
      %s296 = ssub.s32 %s14, 1
      %s297 = smul.u32 2, %s24
      %p298 = scmp.lt.s32.totalorder %s23, 1
      %s299 = scalar_select %p298, %s23, 1
      %p300 = scmp.lt.s32.totalorder %s297, 1
      %s301 = scalar_select %p300, %s297, 1
      %s302 = smul.addr %s299, 2
      %s303 = sadd.s32 %s301, %s302
      %s304 = smul.addr %s303, 4
      %s305 = scalar_lea.vmem %s0, %s304
      %p306 = pneg %p54
      %p307 = pneg %p51
      %p308 = scmp.lt.s32.totalorder %s23, 1
      %s309 = scalar_select %p308, %s23, 1
      %s310 = smul.addr %s309, 16
      %s311 = smul.addr %s310, 4
      %s312 = scalar_lea.vmem %s1, %s311
      %p313 = pneg %p80
      %p314 = pneg %p77
      %p315 = scmp.lt.s32.totalorder %s23, 1
      %s316 = scalar_select %p315, %s23, 1
      %s317 = smul.addr %s316, 16
      %s318 = smul.addr %s317, 4
      %s319 = scalar_lea.vmem %s2, %s318
      %p320 = pneg %p106
      %p321 = pneg %p103
      %p322 = scmp.lt.s32.totalorder %s23, 1
      %s323 = scalar_select %p322, %s23, 1
      %s324 = scalar_lea.vmem %s3, %s323
      %p325 = pneg %p132
      %p326 = pneg %p129
      %p327 = pneg %p153
      %p328 = pneg %p150
      %p329 = pneg %p174
      %p330 = pneg %p171
      %p331 = pneg %p202
      %p332 = pneg %p199
      %s333 = smul.u32 2, %s24
      %p334 = scmp.lt.s32.totalorder %s23, 1
      %s335 = scalar_select %p334, %s23, 1
      %p336 = scmp.lt.s32.totalorder %s333, 1
      %s337 = scalar_select %p336, %s333, 1
      %s338 = smul.addr %s335, 2
      %s339 = sadd.s32 %s337, %s338
      %s340 = smul.addr %s339, 8
      %s341 = scalar_lea.vmem %s6, %s340
      %p342 = pneg %p230
      %p343 = pneg %p227
      %s344 = smul.u32 2, %s24
      %p345 = scmp.lt.s32.totalorder %s23, 1
      %s346 = scalar_select %p345, %s23, 1
      %p347 = scmp.lt.s32.totalorder %s344, 1
      %s348 = scalar_select %p347, %s344, 1
      %s349 = smul.addr %s346, 2
      %s350 = sadd.s32 %s348, %s349
      %s351 = smul.addr %s350, 8
      %s352 = scalar_lea.vmem %s7, %s351
      %s353 = smul.u32 2, %s24
      %p354 = scmp.lt.s32.totalorder %s23, 1
      %s355 = scalar_select %p354, %s23, 1
      %p356 = scmp.lt.s32.totalorder %s353, 1
      %s357 = scalar_select %p356, %s353, 1
      %s358 = smul.addr %s355, 2
      %s359 = sadd.s32 %s357, %s358
      %s360 = smul.addr %s359, 4
      %s361 = scalar_lea.vmem %s0, %s360
      %s362 = smul.u32 2, %s24
      %p363 = scmp.lt.s32.totalorder %s23, 1
      %s364 = scalar_select %p363, %s23, 1
      %s365 = smul.addr %s364, 16
      %s366 = smul.addr %s365, 4
      %s367 = scalar_lea.vmem %s1, %s366
      %p368 = scmp.lt.s32.totalorder %s23, 1
      %s369 = scalar_select %p368, %s23, 1
      %s370 = smul.addr %s369, 16
      %s371 = smul.addr %s370, 4
      %s372 = scalar_lea.vmem %s2, %s371
      %p373 = scmp.lt.s32.totalorder %s23, 1
      %s374 = scalar_select %p373, %s23, 1
      %s375 = scalar_lea.vmem %s3, %s374
      %s376 = smul.u32 2, %s24
      %p377 = scmp.lt.s32.totalorder %s23, 1
      %s378 = scalar_select %p377, %s23, 1
      %p379 = scmp.lt.s32.totalorder %s376, 1
      %s380 = scalar_select %p379, %s376, 1
      %s381 = smul.addr %s378, 2
      %s382 = sadd.s32 %s380, %s381
      %s383 = smul.addr %s382, 8
      %s384 = scalar_lea.vmem %s6, %s383
      %s385 = smul.u32 2, %s24
      %s386 = smul.u32 2, %s24
      %p387 = scmp.lt.s32.totalorder %s23, 1
      %s388 = scalar_select %p387, %s23, 1
      %p389 = scmp.lt.s32.totalorder %s386, 1
      %s390 = scalar_select %p389, %s386, 1
      %s391 = smul.addr %s388, 2
      %s392 = sadd.s32 %s390, %s391
      %s393 = smul.addr %s392, 8
      %s394 = scalar_lea.vmem %s7, %s393
      %s395 = smul.u32 2, %s24
      %v397 = vld [vmem:[%s361] sm:$0xf]
      %v398 = vld [vmem:[%s361 + $0x4] sm:$0xf]
      %v399 = vld [vmem:[%s4] sm:$0xf]
      %v400 = vld [vmem:[%s4 + $0x4] sm:$0xf]
      %v401 = vld [vmem:[%s4 + $0x8] sm:$0xf]
      %v402 = vld [vmem:[%s4 + $0xc] sm:$0xf]
      %v403 = vld [vmem:[%s4 + $0x10] sm:$0xf]
      %v404 = vld [vmem:[%s4 + $0x14] sm:$0xf]
      %v405 = vld [vmem:[%s4 + $0x18] sm:$0xf]
      %v406 = vld [vmem:[%s4 + $0x1c] sm:$0xf]
      %v407 = vld [vmem:[%s4 + $0x20] sm:$0xf]
      %v408 = vld [vmem:[%s4 + $0x24] sm:$0xf]
      %v409 = vld [vmem:[%s4 + $0x28] sm:$0xf]
      %v410 = vld [vmem:[%s4 + $0x2c] sm:$0xf]
      %v411 = vld [vmem:[%s4 + $0x30] sm:$0xf]
      %v412 = vld [vmem:[%s4 + $0x34] sm:$0xf]
      %v413 = vld [vmem:[%s4 + $0x38] sm:$0xf]
      %v414 = vld [vmem:[%s4 + $0x3c] sm:$0xf]
      %v415 = vld [vmem:[%s5] sm:$0x1]
      %v417 = vlaneseq
      %v418 = vshrl.u32 %v417, 7
      %v419 = vsub.s32 0, %v418
      %v420 = vrot.slane %v415, %v419
      %v424 = vunpack.c.l.b16 %v397
      %v425 = vunpack.c.l.b16 %v398
      %v426 = vpack.c.b16 %v425, %v424
      %v444 = vunpack.c.l.b16 %v399
      %v445 = vunpack.c.l.b16 %v400
      %v446 = vunpack.c.l.b16 %v401
      %v447 = vunpack.c.l.b16 %v402
      %v448 = vunpack.c.l.b16 %v403
      %v449 = vunpack.c.l.b16 %v404
      %v450 = vunpack.c.l.b16 %v405
      %v451 = vunpack.c.l.b16 %v406
      %v452 = vunpack.c.l.b16 %v407
      %v453 = vunpack.c.l.b16 %v408
      %v454 = vunpack.c.l.b16 %v409
      %v455 = vunpack.c.l.b16 %v410
      %v456 = vunpack.c.l.b16 %v411
      %v457 = vunpack.c.l.b16 %v412
      %v458 = vunpack.c.l.b16 %v413
      %v459 = vunpack.c.l.b16 %v414
      %v460 = vpack.c.b16 %v445, %v444
      %v461 = vpack.c.b16 %v447, %v446
      %v462 = vpack.c.b16 %v449, %v448
      %v463 = vpack.c.b16 %v451, %v450
      %v464 = vpack.c.b16 %v453, %v452
      %v465 = vpack.c.b16 %v455, %v454
      %v466 = vpack.c.b16 %v457, %v456
      %v467 = vpack.c.b16 %v459, %v458
      %476 = vmatprep.subr.bf16.mxu0 0
      %477 = vmatpush1.bf16.msra.mxu0 %v460
      %478 = vmatprep.subr.bf16.mxu0 0
      %479 = vmatpush1.bf16.msra.mxu0 %v461
      %480 = vmatprep.subr.bf16.mxu0 0
      %481 = vmatpush1.bf16.msra.mxu0 %v462
      %482 = vmatprep.subr.bf16.mxu0 0
      %483 = vmatpush1.bf16.msra.mxu0 %v463
      %484 = vmatprep.subr.bf16.mxu0 0
      %485 = vmatpush1.bf16.msra.mxu0 %v464
      %486 = vmatprep.subr.bf16.mxu0 0
      %487 = vmatpush1.bf16.msra.mxu0 %v465
      %488 = vmatprep.subr.bf16.mxu0 0
      %489 = vmatpush1.bf16.msra.mxu0 %v466
      %490 = vmatprep.subr.bf16.mxu0 0
      %491 = vmatpush1.bf16.msra.mxu0 %v467
      %492 = vmatprep.subr.bf16.mxu0 0
      %493 = vmatpush1.bf16.msra.mxu0 0
      %494 = vmatprep.subr.bf16.mxu0 0
      %495 = vmatpush1.bf16.msra.mxu0 0
      %496 = vmatprep.subr.bf16.mxu0 0
      %497 = vmatpush1.bf16.msra.mxu0 0
      %498 = vmatprep.subr.bf16.mxu0 0
      %499 = vmatpush1.bf16.msra.mxu0 0
      %500 = vmatprep.subr.bf16.mxu0 0
      %501 = vmatpush1.bf16.msra.mxu0 0
      %502 = vmatprep.subr.bf16.mxu0 0
      %503 = vmatpush1.bf16.msra.mxu0 0
      %504 = vmatprep.subr.bf16.mxu0 0
      %505 = vmatpush1.bf16.msra.mxu0 0
      %506 = vmatprep.subr.bf16.mxu0 0
      %507 = vmatpush1.bf16.msra.mxu0 0
      %508 = vmatprep.mubr.bf16.mxu0 0
      %509 = vmatmul.mubr.bf16.gmra.mrb[0].mxu0 %v426
      %v510 = vpop.f32.mrb[0].mxu0
      %v511 = vadd.f32 %v420, %v510
      %v512 = vpop.f32.mrb[0].mxu0
      %v513 = vpop.f32.mrb[0].mxu0
      %v514 = vadd.f32 %v420, %v513
      %v515 = vpop.f32.mrb[0].mxu0
      %516 = vdwg.mxu0
      %v517 = vpack.c.bf16 %v514, %v511
      %v518 = vld [vmem:[%s367] sm:$0xf]
      %v519 = vld [vmem:[%s367 + $0x4] sm:$0xf]
      %v520 = vld [vmem:[%s367 + $0x8] sm:$0xf]
      %v521 = vld [vmem:[%s367 + $0xc] sm:$0xf]
      %v522 = vld [vmem:[%s367 + $0x10] sm:$0xf]
      %v523 = vld [vmem:[%s367 + $0x14] sm:$0xf]
      %v524 = vld [vmem:[%s367 + $0x18] sm:$0xf]
      %v525 = vld [vmem:[%s367 + $0x1c] sm:$0xf]
      %v526 = vld [vmem:[%s367 + $0x20] sm:$0xf]
      %v527 = vld [vmem:[%s367 + $0x24] sm:$0xf]
      %v528 = vld [vmem:[%s367 + $0x28] sm:$0xf]
      %v529 = vld [vmem:[%s367 + $0x2c] sm:$0xf]
      %v530 = vld [vmem:[%s367 + $0x30] sm:$0xf]
      %v531 = vld [vmem:[%s367 + $0x34] sm:$0xf]
      %v532 = vld [vmem:[%s367 + $0x38] sm:$0xf]
      %v533 = vld [vmem:[%s367 + $0x3c] sm:$0xf]
      %v534 = vld [vmem:[%s375] sm:$0x1]
      %v536 = vlaneseq
      %v537 = vshrl.u32 %v536, 7
      %v538 = vsub.s32 0, %v537
      %v539 = vrot.slane %v534, %v538
      %v557 = vunpack.c.l.b16 %v518
      %v558 = vunpack.c.l.b16 %v519
      %v559 = vunpack.c.l.b16 %v520
      %v560 = vunpack.c.l.b16 %v521
      %v561 = vunpack.c.l.b16 %v522
      %v562 = vunpack.c.l.b16 %v523
      %v563 = vunpack.c.l.b16 %v524
      %v564 = vunpack.c.l.b16 %v525
      %v565 = vunpack.c.l.b16 %v526
      %v566 = vunpack.c.l.b16 %v527
      %v567 = vunpack.c.l.b16 %v528
      %v568 = vunpack.c.l.b16 %v529
      %v569 = vunpack.c.l.b16 %v530
      %v570 = vunpack.c.l.b16 %v531
      %v571 = vunpack.c.l.b16 %v532
      %v572 = vunpack.c.l.b16 %v533
      %v573 = vpack.c.b16 %v558, %v557
      %v574 = vpack.c.b16 %v560, %v559
      %v575 = vpack.c.b16 %v562, %v561
      %v576 = vpack.c.b16 %v564, %v563
      %v577 = vpack.c.b16 %v566, %v565
      %v578 = vpack.c.b16 %v568, %v567
      %v579 = vpack.c.b16 %v570, %v569
      %v580 = vpack.c.b16 %v572, %v571
      %589 = vmatprep.subr.bf16.mxu0 0
      %590 = vmatpush1.bf16.xpose.msra.mxu0 %v573
      %591 = vmatprep.subr.bf16.mxu0 0
      %592 = vmatpush1.bf16.xpose.msra.mxu0 %v574
      %593 = vmatprep.subr.bf16.mxu0 0
      %594 = vmatpush1.bf16.xpose.msra.mxu0 %v575
      %595 = vmatprep.subr.bf16.mxu0 0
      %596 = vmatpush1.bf16.xpose.msra.mxu0 %v576
      %597 = vmatprep.subr.bf16.mxu0 0
      %598 = vmatpush1.bf16.xpose.msra.mxu0 %v577
      %599 = vmatprep.subr.bf16.mxu0 0
      %600 = vmatpush1.bf16.xpose.msra.mxu0 %v578
      %601 = vmatprep.subr.bf16.mxu0 0
      %602 = vmatpush1.bf16.xpose.msra.mxu0 %v579
      %603 = vmatprep.subr.bf16.mxu0 0
      %604 = vmatpush1.bf16.xpose.msra.mxu0 %v580
      %605 = vmatprep.subr.bf16.mxu0 0
      %606 = vmatpush1.bf16.xpose.msra.mxu0 0
      %607 = vmatprep.subr.bf16.mxu0 0
      %608 = vmatpush1.bf16.xpose.msra.mxu0 0
      %609 = vmatprep.subr.bf16.mxu0 0
      %610 = vmatpush1.bf16.xpose.msra.mxu0 0
      %611 = vmatprep.subr.bf16.mxu0 0
      %612 = vmatpush1.bf16.xpose.msra.mxu0 0
      %613 = vmatprep.subr.bf16.mxu0 0
      %614 = vmatpush1.bf16.xpose.msra.mxu0 0
      %615 = vmatprep.subr.bf16.mxu0 0
      %616 = vmatpush1.bf16.xpose.msra.mxu0 0
      %617 = vmatprep.subr.bf16.mxu0 0
      %618 = vmatpush1.bf16.xpose.msra.mxu0 0
      %619 = vmatprep.subr.bf16.mxu0 0
      %620 = vmatpush1.bf16.xpose.msra.mxu0 0
      %621 = vmatprep.mubr.bf16.mxu0 0
      %622 = vmatmul.mubr.bf16.gmra.mrb[0].mxu0 %v517
      %v623 = vpop.f32.mrb[0].mxu0
      %v624 = vadd.f32 %v539, %v623
      %v625 = vpop.f32.mrb[0].mxu0
      %v626 = vpop.f32.mrb[0].mxu0
      %v627 = vadd.f32 %v539, %v626
      %v628 = vpop.f32.mrb[0].mxu0
      %629 = vdwg.mxu0
      %630 = vmax.xlane.f32.xlu0 %v624
      %v631 = vpop.xlane.xlu0 %630
      %632 = vmax.xlane.f32.xlu0 %v627
      %v633 = vpop.xlane.xlu0 %632
      %v634 = vsub.f32 %v624, %v631
      %v635 = vsub.f32 %v627, %v633
      %v636 = vmul.f32 %v634, 1.442695
      %v637 = vpow.pop %v636
      %v638 = vmul.f32 %v635, 1.442695
      %v639 = vpow.pop %v638
      %640 = vadd.xlane.f32.xlu0 %v637
      %v641 = vpop.xlane.xlu0 %640
      %642 = vadd.xlane.f32.xlu0 %v639
      %v643 = vpop.xlane.xlu0 %642
      %v644 = vrcp.pop %v641
      %v645 = vrcp.pop %v643
      %v646 = vmul.f32 %v637, %v644
      %v647 = vmul.f32 %v639, %v645
      %648 = vst [vmem:[%s394] sm:$0xff] %v646
      %649 = vst [vmem:[%s394 + $0x8] sm:$0xff] %v647
      %v650 = vpack.c.bf16 %v647, %v646
      %v651 = vld [vmem:[%s372] sm:$0xf]
      %v652 = vld [vmem:[%s372 + $0x4] sm:$0xf]
      %v653 = vld [vmem:[%s372 + $0x8] sm:$0xf]
      %v654 = vld [vmem:[%s372 + $0xc] sm:$0xf]
      %v655 = vld [vmem:[%s372 + $0x10] sm:$0xf]
      %v656 = vld [vmem:[%s372 + $0x14] sm:$0xf]
      %v657 = vld [vmem:[%s372 + $0x18] sm:$0xf]
      %v658 = vld [vmem:[%s372 + $0x1c] sm:$0xf]
      %v659 = vld [vmem:[%s372 + $0x20] sm:$0xf]
      %v660 = vld [vmem:[%s372 + $0x24] sm:$0xf]
      %v661 = vld [vmem:[%s372 + $0x28] sm:$0xf]
      %v662 = vld [vmem:[%s372 + $0x2c] sm:$0xf]
      %v663 = vld [vmem:[%s372 + $0x30] sm:$0xf]
      %v664 = vld [vmem:[%s372 + $0x34] sm:$0xf]
      %v665 = vld [vmem:[%s372 + $0x38] sm:$0xf]
      %v666 = vld [vmem:[%s372 + $0x3c] sm:$0xf]
      %v683 = vunpack.c.l.b16 %v651
      %v684 = vunpack.c.l.b16 %v652
      %v685 = vunpack.c.l.b16 %v653
      %v686 = vunpack.c.l.b16 %v654
      %v687 = vunpack.c.l.b16 %v655
      %v688 = vunpack.c.l.b16 %v656
      %v689 = vunpack.c.l.b16 %v657
      %v690 = vunpack.c.l.b16 %v658
      %v691 = vunpack.c.l.b16 %v659
      %v692 = vunpack.c.l.b16 %v660
      %v693 = vunpack.c.l.b16 %v661
      %v694 = vunpack.c.l.b16 %v662
      %v695 = vunpack.c.l.b16 %v663
      %v696 = vunpack.c.l.b16 %v664
      %v697 = vunpack.c.l.b16 %v665
      %v698 = vunpack.c.l.b16 %v666
      %v699 = vpack.c.b16 %v684, %v683
      %v700 = vpack.c.b16 %v686, %v685
      %v701 = vpack.c.b16 %v688, %v687
      %v702 = vpack.c.b16 %v690, %v689
      %v703 = vpack.c.b16 %v692, %v691
      %v704 = vpack.c.b16 %v694, %v693
      %v705 = vpack.c.b16 %v696, %v695
      %v706 = vpack.c.b16 %v698, %v697
      %715 = vmatprep.subr.bf16.mxu0 0
      %716 = vmatpush1.bf16.msra.mxu0 %v699
      %717 = vmatprep.subr.bf16.mxu0 0
      %718 = vmatpush1.bf16.msra.mxu0 %v700
      %719 = vmatprep.subr.bf16.mxu0 0
      %720 = vmatpush1.bf16.msra.mxu0 %v701
      %721 = vmatprep.subr.bf16.mxu0 0
      %722 = vmatpush1.bf16.msra.mxu0 %v702
      %723 = vmatprep.subr.bf16.mxu0 0
      %724 = vmatpush1.bf16.msra.mxu0 %v703
      %725 = vmatprep.subr.bf16.mxu0 0
      %726 = vmatpush1.bf16.msra.mxu0 %v704
      %727 = vmatprep.subr.bf16.mxu0 0
      %728 = vmatpush1.bf16.msra.mxu0 %v705
      %729 = vmatprep.subr.bf16.mxu0 0
      %730 = vmatpush1.bf16.msra.mxu0 %v706
      %731 = vmatprep.subr.bf16.mxu0 0
      %732 = vmatpush1.bf16.msra.mxu0 0
      %733 = vmatprep.subr.bf16.mxu0 0
      %734 = vmatpush1.bf16.msra.mxu0 0
      %735 = vmatprep.subr.bf16.mxu0 0
      %736 = vmatpush1.bf16.msra.mxu0 0
      %737 = vmatprep.subr.bf16.mxu0 0
      %738 = vmatpush1.bf16.msra.mxu0 0
      %739 = vmatprep.subr.bf16.mxu0 0
      %740 = vmatpush1.bf16.msra.mxu0 0
      %741 = vmatprep.subr.bf16.mxu0 0
      %742 = vmatpush1.bf16.msra.mxu0 0
      %743 = vmatprep.subr.bf16.mxu0 0
      %744 = vmatpush1.bf16.msra.mxu0 0
      %745 = vmatprep.subr.bf16.mxu0 0
      %746 = vmatpush1.bf16.msra.mxu0 0
      %747 = vmatprep.mubr.bf16.mxu0 0
      %748 = vmatmul.mubr.bf16.gmra.mrb[0].mxu0 %v650
      %v749 = vpop.f32.mrb[0].mxu0
      %v750 = vadd.f32 0.0, %v749
      %v751 = vpop.f32.mrb[0].mxu0
      %v752 = vpop.f32.mrb[0].mxu0
      %v753 = vadd.f32 0.0, %v752
      %v754 = vpop.f32.mrb[0].mxu0
      %755 = vdwg.mxu0
      %756 = vst [vmem:[%s384] sm:$0xff] %v750
      %757 = vst [vmem:[%s384 + $0x8] sm:$0xff] %v753
      %s758 = smul.u32 2, %s24
      %p759 = scmp.lt.s32.totalorder %s23, 1
      %s760 = scalar_select %p759, %s23, 1
      %p761 = scmp.lt.s32.totalorder %s758, 1
      %s762 = scalar_select %p761, %s758, 1
      %s763 = smul.addr %s760, 2
      %s764 = sadd.s32 %s762, %s763
      %s765 = smul.addr %s764, 8
      %s766 = scalar_lea.vmem %s6, %s765
      %s767 = smul.u32 2, %s24
      %p768 = scmp.lt.s32.totalorder %s23, 1
      %s769 = scalar_select %p768, %s23, 1
      %p770 = scmp.lt.s32.totalorder %s767, 1
      %s771 = scalar_select %p770, %s767, 1
      %s772 = smul.addr %s769, 2
      %s773 = sadd.s32 %s771, %s772
      %s774 = smul.addr %s773, 8
      %s775 = scalar_lea.vmem %s7, %s774
      // Predicated region
      $region45: #{span_attention.3} parent=43 // pred_check
        %p776 = pneg %p199
      $region46: #{span_attention.3} parent=43 // pred_check_branch
        %778 = sbr.rel (%p776) target = $region48
      $region47: #{span_attention.3} parent=43 // pred_region
        %s779 = smul.u32 2, %s24
      $region48: #{span_attention.3} parent=43 // pred_fallthru
        _
      // Predicated region
      $region49: #{span_attention.3} parent=43 // pred_check
        %p780 = pneg %p227
      $region50: #{span_attention.3} parent=43 // pred_check_branch
        %782 = sbr.rel (%p780) target = $region52
      $region51: #{span_attention.3} parent=43 // pred_region
        %s783 = smul.u32 2, %s24
      $region52: #{span_attention.3} parent=43 // pred_fallthru
        _
    $region44: #{span_attention.3} parent=5 // pred_fallthru
      _
    %p784 = scmp.le.s32.totalorder 2, %s14
    // Predicated region
    $region53: #{span_attention.3} parent=5 // pred_check
      %p785 = pneg %p784
    $region54: #{span_attention.3} parent=5 // pred_check_branch
      %787 = sbr.rel (%p785) target = $region56
    $region55: #{span_attention.3} parent=5 // pred_region
      %s788 = ssub.s32 %s14, 2
      // Predicated region
      $region57: #{span_attention.3} parent=55 // pred_check
        %p789 = pneg %p205
      $region58: #{span_attention.3} parent=55 // pred_check_branch
        %791 = sbr.rel (%p789) target = $region60
      $region59: #{span_attention.3} parent=55 // pred_region
        %s792 = smul.u32 2, %s26
        %p793 = scmp.lt.s32.totalorder %s25, 1
        %s794 = scalar_select %p793, %s25, 1
        %p795 = scmp.lt.s32.totalorder %s792, 1
        %s796 = scalar_select %p795, %s792, 1
        %s797 = smul.addr %s794, 2
        %s798 = sadd.s32 %s796, %s797
        %s799 = smul.addr %s798, 8
        %s800 = scalar_lea.vmem %s6, %s799
      $region60: #{span_attention.3} parent=55 // pred_fallthru
        _
      // Predicated region
      $region61: #{span_attention.3} parent=55 // pred_check
        %p801 = pneg %p233
      $region62: #{span_attention.3} parent=55 // pred_check_branch
        %803 = sbr.rel (%p801) target = $region64
      $region63: #{span_attention.3} parent=55 // pred_region
        %s804 = smul.u32 2, %s26
        %p805 = scmp.lt.s32.totalorder %s25, 1
        %s806 = scalar_select %p805, %s25, 1
        %p807 = scmp.lt.s32.totalorder %s804, 1
        %s808 = scalar_select %p807, %s804, 1
        %s809 = smul.addr %s806, 2
        %s810 = sadd.s32 %s808, %s809
        %s811 = smul.addr %s810, 8
        %s812 = scalar_lea.vmem %s7, %s811
      $region64: #{span_attention.3} parent=55 // pred_fallthru
        _
    $region56: #{span_attention.3} parent=5 // pred_fallthru
      _
  $region6: #{span_attention.3} parent=0 // loop_footer
    %s18 = sadd.s32 1, %s14
  $region7: #{span_attention.3} parent=0 // loop_footer_branch
    %13 = sbr.rel target = $region3
  $region8: #{span_attention.3} parent=0 // loop_exit
    _

// kernel: span_attention.2
$region0: #{span_attention.2}
  #allocation0 [shape = 'u32[]', space=smem, size = 0x4, offset = 0x4, fixed_abs, tag = 'smem constant byte address 0x4 - core index']
  #allocation1 [shape = 'u32[144,128]{1,0:T(1,128)}', space=vmem, size = 0x12000, scoped, tag = 'internal scratch']
  %s0 = inlined_call_operand.vmem [shape: bf16[256,128], index: 0, kind: input, shape index: {}]
  %s1 = inlined_call_operand.vmem [shape: bf16[128,128], index: 1, kind: input, shape index: {}]
  %s2 = inlined_call_operand.vmem [shape: f32[1,128], index: 2, kind: input, shape index: {}]
  %s3 = inlined_call_operand.vmem [shape: bf16[128,128], index: 3, kind: input, shape index: {}]
  %s4 = inlined_call_operand.vmem [shape: f32[1,128], index: 4, kind: input, shape index: {}]
  %s5 = inlined_call_operand.vmem [shape: bf16[256,128], index: 5, kind: output, shape index: {0}]
  %s6 = inlined_call_operand.vmem [shape: bf16[256,128], index: 6, kind: output, shape index: {1}]
  %7 = xla_tuple %s5, %s6
  %s8 = sld [smem:[#allocation0]]
  $region38: #{span_attention.2} parent=0
    _
  %s10 = ssub.s32 1, %s8
  %s11 = scalar_select 0, %s10, %s8
  // Predicated region
  $region2: #{span_attention.2} parent=0 // pred_check
    _
  $region3: #{span_attention.2} parent=0 // pred_check_branch
    %13 = sbr.rel (0) target = $region5
  $region4: #{span_attention.2} parent=0 // pred_region
    _
  $region5: #{span_attention.2} parent=0 // pred_fallthru
    _
  // Predicated region
  $region6: #{span_attention.2} parent=0 // pred_check
    _
  $region7: #{span_attention.2} parent=0 // pred_check_branch
    %15 = sbr.rel (0) target = $region9
  $region8: #{span_attention.2} parent=0 // pred_region
    _
  $region9: #{span_attention.2} parent=0 // pred_fallthru
    _
  // Predicated region
  $region10: #{span_attention.2} parent=0 // pred_check
    _
  $region11: #{span_attention.2} parent=0 // pred_check_branch
    %17 = sbr.rel (0) target = $region13
  $region12: #{span_attention.2} parent=0 // pred_region
    _
  $region13: #{span_attention.2} parent=0 // pred_fallthru
    _
  // Predicated region
  $region14: #{span_attention.2} parent=0 // pred_check
    _
  $region15: #{span_attention.2} parent=0 // pred_check_branch
    %19 = sbr.rel (0) target = $region17
  $region16: #{span_attention.2} parent=0 // pred_region
    _
  $region17: #{span_attention.2} parent=0 // pred_fallthru
    _
  // Predicated region
  $region18: #{span_attention.2} parent=0 // pred_check
    _
  $region19: #{span_attention.2} parent=0 // pred_check_branch
    %21 = sbr.rel (0) target = $region21
  $region20: #{span_attention.2} parent=0 // pred_region
    _
  $region21: #{span_attention.2} parent=0 // pred_fallthru
    _
  %v23 = vld [vmem:[%s0] sm:$0xf]
  %v24 = vld [vmem:[%s0 + $0x4] sm:$0xf]
  %v25 = vld [vmem:[%s0 + $0x8] sm:$0xf]
  %v26 = vld [vmem:[%s0 + $0xc] sm:$0xf]
  %v27 = vld [vmem:[%s0 + $0x10] sm:$0xf]
  %v28 = vld [vmem:[%s0 + $0x14] sm:$0xf]
  %v29 = vld [vmem:[%s0 + $0x18] sm:$0xf]
  %v30 = vld [vmem:[%s0 + $0x1c] sm:$0xf]
  %v31 = vld [vmem:[%s0 + $0x20] sm:$0xf]
  %v32 = vld [vmem:[%s0 + $0x24] sm:$0xf]
  %v33 = vld [vmem:[%s0 + $0x28] sm:$0xf]
  %v34 = vld [vmem:[%s0 + $0x2c] sm:$0xf]
  %v35 = vld [vmem:[%s0 + $0x30] sm:$0xf]
  %v36 = vld [vmem:[%s0 + $0x34] sm:$0xf]
  %v37 = vld [vmem:[%s0 + $0x38] sm:$0xf]
  %v38 = vld [vmem:[%s0 + $0x3c] sm:$0xf]
  %v39 = vld [vmem:[%s0 + $0x40] sm:$0xf]
  %v40 = vld [vmem:[%s0 + $0x44] sm:$0xf]
  %v41 = vld [vmem:[%s0 + $0x48] sm:$0xf]
  %v42 = vld [vmem:[%s0 + $0x4c] sm:$0xf]
  %v43 = vld [vmem:[%s0 + $0x50] sm:$0xf]
  %v44 = vld [vmem:[%s0 + $0x54] sm:$0xf]
  %v45 = vld [vmem:[%s0 + $0x58] sm:$0xf]
  %v46 = vld [vmem:[%s0 + $0x5c] sm:$0xf]
  %v47 = vld [vmem:[%s0 + $0x60] sm:$0xf]
  %v48 = vld [vmem:[%s0 + $0x64] sm:$0xf]
  %v49 = vld [vmem:[%s0 + $0x68] sm:$0xf]
  %v50 = vld [vmem:[%s0 + $0x6c] sm:$0xf]
  %v51 = vld [vmem:[%s0 + $0x70] sm:$0xf]
  %v52 = vld [vmem:[%s0 + $0x74] sm:$0xf]
  %v53 = vld [vmem:[%s0 + $0x78] sm:$0xf]
  %v54 = vld [vmem:[%s0 + $0x7c] sm:$0xf]
  %v55 = vld [vmem:[%s1] sm:$0xf]
  %v56 = vld [vmem:[%s1 + $0x4] sm:$0xf]
  %v57 = vld [vmem:[%s1 + $0x8] sm:$0xf]
  %v58 = vld [vmem:[%s1 + $0xc] sm:$0xf]
  %v59 = vld [vmem:[%s1 + $0x10] sm:$0xf]
  %v60 = vld [vmem:[%s1 + $0x14] sm:$0xf]
  %v61 = vld [vmem:[%s1 + $0x18] sm:$0xf]
  %v62 = vld [vmem:[%s1 + $0x1c] sm:$0xf]
  %v63 = vld [vmem:[%s1 + $0x20] sm:$0xf]
  %v64 = vld [vmem:[%s1 + $0x24] sm:$0xf]
  %v65 = vld [vmem:[%s1 + $0x28] sm:$0xf]
  %v66 = vld [vmem:[%s1 + $0x2c] sm:$0xf]
  %v67 = vld [vmem:[%s1 + $0x30] sm:$0xf]
  %v68 = vld [vmem:[%s1 + $0x34] sm:$0xf]
  %v69 = vld [vmem:[%s1 + $0x38] sm:$0xf]
  %v70 = vld [vmem:[%s1 + $0x3c] sm:$0xf]
  %v71 = vld [vmem:[%s2] sm:$0x1]
  %v73 = vlaneseq
  %v74 = vshrl.u32 %v73, 7
  %v75 = vsub.s32 0, %v74
  %v76 = vrot.slane %v71, %v75
  %v110 = vunpack.c.l.b16 %v23
  %v111 = vunpack.c.l.b16 %v24
  %v112 = vunpack.c.l.b16 %v25
  %v113 = vunpack.c.l.b16 %v26
  %v114 = vunpack.c.l.b16 %v27
  %v115 = vunpack.c.l.b16 %v28
  %v116 = vunpack.c.l.b16 %v29
  %v117 = vunpack.c.l.b16 %v30
  %v118 = vunpack.c.l.b16 %v31
  %v119 = vunpack.c.l.b16 %v32
  %v120 = vunpack.c.l.b16 %v33
  %v121 = vunpack.c.l.b16 %v34
  %v122 = vunpack.c.l.b16 %v35
  %v123 = vunpack.c.l.b16 %v36
  %v124 = vunpack.c.l.b16 %v37
  %v125 = vunpack.c.l.b16 %v38
  %v126 = vunpack.c.l.b16 %v39
  %v127 = vunpack.c.l.b16 %v40
  %v128 = vunpack.c.l.b16 %v41
  %v129 = vunpack.c.l.b16 %v42
  %v130 = vunpack.c.l.b16 %v43
  %v131 = vunpack.c.l.b16 %v44
  %v132 = vunpack.c.l.b16 %v45
  %v133 = vunpack.c.l.b16 %v46
  %v134 = vunpack.c.l.b16 %v47
  %v135 = vunpack.c.l.b16 %v48
  %v136 = vunpack.c.l.b16 %v49
  %v137 = vunpack.c.l.b16 %v50
  %v138 = vunpack.c.l.b16 %v51
  %v139 = vunpack.c.l.b16 %v52
  %v140 = vunpack.c.l.b16 %v53
  %v141 = vunpack.c.l.b16 %v54
  %v142 = vpack.c.b16 %v111, %v110
  %v143 = vpack.c.b16 %v113, %v112
  %v144 = vpack.c.b16 %v115, %v114
  %v145 = vpack.c.b16 %v117, %v116
  %v146 = vpack.c.b16 %v119, %v118
  %v147 = vpack.c.b16 %v121, %v120
  %v148 = vpack.c.b16 %v123, %v122
  %v149 = vpack.c.b16 %v125, %v124
  %v150 = vpack.c.b16 %v127, %v126
  %v151 = vpack.c.b16 %v129, %v128
  %v152 = vpack.c.b16 %v131, %v130
  %v153 = vpack.c.b16 %v133, %v132
  %v154 = vpack.c.b16 %v135, %v134
  %v155 = vpack.c.b16 %v137, %v136
  %v156 = vpack.c.b16 %v139, %v138
  %v157 = vpack.c.b16 %v141, %v140
  %v190 = vunpack.c.l.b16 %v55
  %v191 = vunpack.c.l.b16 %v56
  %v192 = vunpack.c.l.b16 %v57
  %v193 = vunpack.c.l.b16 %v58
  %v194 = vunpack.c.l.b16 %v59
  %v195 = vunpack.c.l.b16 %v60
  %v196 = vunpack.c.l.b16 %v61
  %v197 = vunpack.c.l.b16 %v62
  %v198 = vunpack.c.l.b16 %v63
  %v199 = vunpack.c.l.b16 %v64
  %v200 = vunpack.c.l.b16 %v65
  %v201 = vunpack.c.l.b16 %v66
  %v202 = vunpack.c.l.b16 %v67
  %v203 = vunpack.c.l.b16 %v68
  %v204 = vunpack.c.l.b16 %v69
  %v205 = vunpack.c.l.b16 %v70
  %v206 = vpack.c.b16 %v191, %v190
  %v207 = vpack.c.b16 %v193, %v192
  %v208 = vpack.c.b16 %v195, %v194
  %v209 = vpack.c.b16 %v197, %v196
  %v210 = vpack.c.b16 %v199, %v198
  %v211 = vpack.c.b16 %v201, %v200
  %v212 = vpack.c.b16 %v203, %v202
  %v213 = vpack.c.b16 %v205, %v204
  %222 = vmatprep.subr.bf16.mxu0 0
  %223 = vmatpush1.bf16.msra.mxu0 %v206
  %224 = vmatprep.subr.bf16.mxu0 0
  %225 = vmatpush1.bf16.msra.mxu0 %v207
  %226 = vmatprep.subr.bf16.mxu0 0
  %227 = vmatpush1.bf16.msra.mxu0 %v208
  %228 = vmatprep.subr.bf16.mxu0 0
  %229 = vmatpush1.bf16.msra.mxu0 %v209
  %230 = vmatprep.subr.bf16.mxu0 0
  %231 = vmatpush1.bf16.msra.mxu0 %v210
  %232 = vmatprep.subr.bf16.mxu0 0
  %233 = vmatpush1.bf16.msra.mxu0 %v211
  %234 = vmatprep.subr.bf16.mxu0 0
  %235 = vmatpush1.bf16.msra.mxu0 %v212
  %236 = vmatprep.subr.bf16.mxu0 0
  %237 = vmatpush1.bf16.msra.mxu0 %v213
  %238 = vmatprep.subr.bf16.mxu0 0
  %239 = vmatpush1.bf16.msra.mxu0 0
  %240 = vmatprep.subr.bf16.mxu0 0
  %241 = vmatpush1.bf16.msra.mxu0 0
  %242 = vmatprep.subr.bf16.mxu0 0
  %243 = vmatpush1.bf16.msra.mxu0 0
  %244 = vmatprep.subr.bf16.mxu0 0
  %245 = vmatpush1.bf16.msra.mxu0 0
  %246 = vmatprep.subr.bf16.mxu0 0
  %247 = vmatpush1.bf16.msra.mxu0 0
  %248 = vmatprep.subr.bf16.mxu0 0
  %249 = vmatpush1.bf16.msra.mxu0 0
  %250 = vmatprep.subr.bf16.mxu0 0
  %251 = vmatpush1.bf16.msra.mxu0 0
  %252 = vmatprep.subr.bf16.mxu0 0
  %253 = vmatpush1.bf16.msra.mxu0 0
  %254 = vmatprep.mubr.bf16.mxu0 0
  %255 = vmatmul.mubr.bf16.gmra.mrb[0].mxu0 %v142
  %v256 = vpop.f32.mrb[0].mxu0
  %v257 = vadd.f32 %v76, %v256
  %v258 = vpop.f32.mrb[0].mxu0
  %v259 = vpop.f32.mrb[0].mxu0
  %v260 = vadd.f32 %v76, %v259
  %v261 = vpop.f32.mrb[0].mxu0
  %262 = vmatprep.mubr.bf16.mxu0 0
  %263 = vmatmul.mubr.bf16.gmra.mrb[0].mxu0 %v143
  %v264 = vpop.f32.mrb[0].mxu0
  %v265 = vadd.f32 %v76, %v264
  %v266 = vpop.f32.mrb[0].mxu0
  %v267 = vpop.f32.mrb[0].mxu0
  %v268 = vadd.f32 %v76, %v267
  %v269 = vpop.f32.mrb[0].mxu0
  %270 = vmatprep.mubr.bf16.mxu0 0
  %271 = vmatmul.mubr.bf16.gmra.mrb[0].mxu0 %v144
  %v272 = vpop.f32.mrb[0].mxu0
  %v273 = vadd.f32 %v76, %v272
  %v274 = vpop.f32.mrb[0].mxu0
  %v275 = vpop.f32.mrb[0].mxu0
  %v276 = vadd.f32 %v76, %v275
  %v277 = vpop.f32.mrb[0].mxu0
  %278 = vmatprep.mubr.bf16.mxu0 0
  %279 = vmatmul.mubr.bf16.gmra.mrb[0].mxu0 %v145
  %v280 = vpop.f32.mrb[0].mxu0
  %v281 = vadd.f32 %v76, %v280
  %v282 = vpop.f32.mrb[0].mxu0
  %v283 = vpop.f32.mrb[0].mxu0
  %v284 = vadd.f32 %v76, %v283
  %v285 = vpop.f32.mrb[0].mxu0
  %286 = vmatprep.mubr.bf16.mxu0 0
  %287 = vmatmul.mubr.bf16.gmra.mrb[0].mxu0 %v146
  %v288 = vpop.f32.mrb[0].mxu0
  %v289 = vadd.f32 %v76, %v288
  %v290 = vpop.f32.mrb[0].mxu0
  %v291 = vpop.f32.mrb[0].mxu0
  %v292 = vadd.f32 %v76, %v291
  %v293 = vpop.f32.mrb[0].mxu0
  %294 = vmatprep.mubr.bf16.mxu0 0
  %295 = vmatmul.mubr.bf16.gmra.mrb[0].mxu0 %v147
  %v296 = vpop.f32.mrb[0].mxu0
  %v297 = vadd.f32 %v76, %v296
  %v298 = vpop.f32.mrb[0].mxu0
  %v299 = vpop.f32.mrb[0].mxu0
  %v300 = vadd.f32 %v76, %v299
  %v301 = vpop.f32.mrb[0].mxu0
  %302 = vmatprep.mubr.bf16.mxu0 0
  %303 = vmatmul.mubr.bf16.gmra.mrb[0].mxu0 %v148
  %v304 = vpop.f32.mrb[0].mxu0
  %v305 = vadd.f32 %v76, %v304
  %v306 = vpop.f32.mrb[0].mxu0
  %v307 = vpop.f32.mrb[0].mxu0
  %v308 = vadd.f32 %v76, %v307
  %v309 = vpop.f32.mrb[0].mxu0
  %310 = vmatprep.mubr.bf16.mxu0 0
  %311 = vmatmul.mubr.bf16.gmra.mrb[0].mxu0 %v149
  %v312 = vpop.f32.mrb[0].mxu0
  %v313 = vadd.f32 %v76, %v312
  %v314 = vpop.f32.mrb[0].mxu0
  %v315 = vpop.f32.mrb[0].mxu0
  %v316 = vadd.f32 %v76, %v315
  %v317 = vpop.f32.mrb[0].mxu0
  %318 = vmatprep.mubr.bf16.mxu0 0
  %319 = vmatmul.mubr.bf16.gmra.mrb[0].mxu0 %v150
  %v320 = vpop.f32.mrb[0].mxu0
  %v321 = vadd.f32 %v76, %v320
  %v322 = vpop.f32.mrb[0].mxu0
  %v323 = vpop.f32.mrb[0].mxu0
  %v324 = vadd.f32 %v76, %v323
  %v325 = vpop.f32.mrb[0].mxu0
  %326 = vmatprep.mubr.bf16.mxu0 0
  %327 = vmatmul.mubr.bf16.gmra.mrb[0].mxu0 %v151
  %v328 = vpop.f32.mrb[0].mxu0
  %v329 = vadd.f32 %v76, %v328
  %v330 = vpop.f32.mrb[0].mxu0
  %v331 = vpop.f32.mrb[0].mxu0
  %v332 = vadd.f32 %v76, %v331
  %v333 = vpop.f32.mrb[0].mxu0
  %334 = vmatprep.mubr.bf16.mxu0 0
  %335 = vmatmul.mubr.bf16.gmra.mrb[0].mxu0 %v152
  %v336 = vpop.f32.mrb[0].mxu0
  %v337 = vadd.f32 %v76, %v336
  %v338 = vpop.f32.mrb[0].mxu0
  %v339 = vpop.f32.mrb[0].mxu0
  %v340 = vadd.f32 %v76, %v339
  %v341 = vpop.f32.mrb[0].mxu0
  %342 = vmatprep.mubr.bf16.mxu0 0
  %343 = vmatmul.mubr.bf16.gmra.mrb[0].mxu0 %v153
  %v344 = vpop.f32.mrb[0].mxu0
  %v345 = vadd.f32 %v76, %v344
  %v346 = vpop.f32.mrb[0].mxu0
  %v347 = vpop.f32.mrb[0].mxu0
  %v348 = vadd.f32 %v76, %v347
  %v349 = vpop.f32.mrb[0].mxu0
  %350 = vmatprep.mubr.bf16.mxu0 0
  %351 = vmatmul.mubr.bf16.gmra.mrb[0].mxu0 %v154
  %v352 = vpop.f32.mrb[0].mxu0
  %v353 = vadd.f32 %v76, %v352
  %v354 = vpop.f32.mrb[0].mxu0
  %v355 = vpop.f32.mrb[0].mxu0
  %v356 = vadd.f32 %v76, %v355
  %v357 = vpop.f32.mrb[0].mxu0
  %358 = vmatprep.mubr.bf16.mxu0 0
  %359 = vmatmul.mubr.bf16.gmra.mrb[0].mxu0 %v155
  %v360 = vpop.f32.mrb[0].mxu0
  %v361 = vadd.f32 %v76, %v360
  %v362 = vpop.f32.mrb[0].mxu0
  %v363 = vpop.f32.mrb[0].mxu0
  %v364 = vadd.f32 %v76, %v363
  %v365 = vpop.f32.mrb[0].mxu0
  %366 = vmatprep.mubr.bf16.mxu0 0
  %367 = vmatmul.mubr.bf16.gmra.mrb[0].mxu0 %v156
  %v368 = vpop.f32.mrb[0].mxu0
  %v369 = vadd.f32 %v76, %v368
  %v370 = vpop.f32.mrb[0].mxu0
  %v371 = vpop.f32.mrb[0].mxu0
  %v372 = vadd.f32 %v76, %v371
  %v373 = vpop.f32.mrb[0].mxu0
  %374 = vmatprep.mubr.bf16.mxu0 0
  %375 = vmatmul.mubr.bf16.gmra.mrb[0].mxu0 %v157
  %v376 = vpop.f32.mrb[0].mxu0
  %v377 = vadd.f32 %v76, %v376
  %v378 = vpop.f32.mrb[0].mxu0
  %v379 = vpop.f32.mrb[0].mxu0
  %v380 = vadd.f32 %v76, %v379
  %v381 = vpop.f32.mrb[0].mxu0
  %382 = vdwg.mxu0
  %v383 = vld [vmem:[%s3] sm:$0xf]
  %v384 = vld [vmem:[%s3 + $0x4] sm:$0xf]
  %v385 = vld [vmem:[%s3 + $0x8] sm:$0xf]
  %v386 = vld [vmem:[%s3 + $0xc] sm:$0xf]
  %v387 = vld [vmem:[%s3 + $0x10] sm:$0xf]
  %v388 = vld [vmem:[%s3 + $0x14] sm:$0xf]
  %v389 = vld [vmem:[%s3 + $0x18] sm:$0xf]
  %v390 = vld [vmem:[%s3 + $0x1c] sm:$0xf]
  %v391 = vld [vmem:[%s3 + $0x20] sm:$0xf]
  %v392 = vld [vmem:[%s3 + $0x24] sm:$0xf]
  %v393 = vld [vmem:[%s3 + $0x28] sm:$0xf]
  %v394 = vld [vmem:[%s3 + $0x2c] sm:$0xf]
  %v395 = vld [vmem:[%s3 + $0x30] sm:$0xf]
  %v396 = vld [vmem:[%s3 + $0x34] sm:$0xf]
  %v397 = vld [vmem:[%s3 + $0x38] sm:$0xf]
  %v398 = vld [vmem:[%s3 + $0x3c] sm:$0xf]
  %v399 = vld [vmem:[%s4] sm:$0x1]
  %v401 = vlaneseq
  %v402 = vshrl.u32 %v401, 7
  %v403 = vsub.s32 0, %v402
  %v404 = vrot.slane %v399, %v403
  %v422 = vunpack.c.l.b16 %v383
  %v423 = vunpack.c.l.b16 %v384
  %v424 = vunpack.c.l.b16 %v385
  %v425 = vunpack.c.l.b16 %v386
  %v426 = vunpack.c.l.b16 %v387
  %v427 = vunpack.c.l.b16 %v388
  %v428 = vunpack.c.l.b16 %v389
  %v429 = vunpack.c.l.b16 %v390
  %v430 = vunpack.c.l.b16 %v391
  %v431 = vunpack.c.l.b16 %v392
  %v432 = vunpack.c.l.b16 %v393
  %v433 = vunpack.c.l.b16 %v394
  %v434 = vunpack.c.l.b16 %v395
  %v435 = vunpack.c.l.b16 %v396
  %v436 = vunpack.c.l.b16 %v397
  %v437 = vunpack.c.l.b16 %v398
  %v438 = vpack.c.b16 %v423, %v422
  %v439 = vpack.c.b16 %v425, %v424
  %v440 = vpack.c.b16 %v427, %v426
  %v441 = vpack.c.b16 %v429, %v428
  %v442 = vpack.c.b16 %v431, %v430
  %v443 = vpack.c.b16 %v433, %v432
  %v444 = vpack.c.b16 %v435, %v434
  %v445 = vpack.c.b16 %v437, %v436
  %454 = vmatprep.subr.bf16.mxu0 0
  %455 = vmatpush1.bf16.msra.mxu0 %v438
  %456 = vmatprep.subr.bf16.mxu0 0
  %457 = vmatpush1.bf16.msra.mxu0 %v439
  %458 = vmatprep.subr.bf16.mxu0 0
  %459 = vmatpush1.bf16.msra.mxu0 %v440
  %460 = vmatprep.subr.bf16.mxu0 0
  %461 = vmatpush1.bf16.msra.mxu0 %v441
  %462 = vmatprep.subr.bf16.mxu0 0
  %463 = vmatpush1.bf16.msra.mxu0 %v442
  %464 = vmatprep.subr.bf16.mxu0 0
  %465 = vmatpush1.bf16.msra.mxu0 %v443
  %466 = vmatprep.subr.bf16.mxu0 0
  %467 = vmatpush1.bf16.msra.mxu0 %v444
  %468 = vmatprep.subr.bf16.mxu0 0
  %469 = vmatpush1.bf16.msra.mxu0 %v445
  %470 = vmatprep.subr.bf16.mxu0 0
  %471 = vmatpush1.bf16.msra.mxu0 0
  %472 = vmatprep.subr.bf16.mxu0 0
  %473 = vmatpush1.bf16.msra.mxu0 0
  %474 = vmatprep.subr.bf16.mxu0 0
  %475 = vmatpush1.bf16.msra.mxu0 0
  %476 = vmatprep.subr.bf16.mxu0 0
  %477 = vmatpush1.bf16.msra.mxu0 0
  %478 = vmatprep.subr.bf16.mxu0 0
  %479 = vmatpush1.bf16.msra.mxu0 0
  %480 = vmatprep.subr.bf16.mxu0 0
  %481 = vmatpush1.bf16.msra.mxu0 0
  %482 = vmatprep.subr.bf16.mxu0 0
  %483 = vmatpush1.bf16.msra.mxu0 0
  %484 = vmatprep.subr.bf16.mxu0 0
  %485 = vmatpush1.bf16.msra.mxu0 0
  %486 = vmatprep.mubr.bf16.mxu0 0
  %487 = vmatmul.mubr.bf16.gmra.mrb[0].mxu0 %v142
  %v488 = vpop.f32.mrb[0].mxu0
  %v489 = vadd.f32 %v404, %v488
  %v490 = vpop.f32.mrb[0].mxu0
  %v491 = vpop.f32.mrb[0].mxu0
  %v492 = vadd.f32 %v404, %v491
  %v493 = vpop.f32.mrb[0].mxu0
  %494 = vmatprep.mubr.bf16.mxu0 0
  %495 = vmatmul.mubr.bf16.gmra.mrb[0].mxu0 %v143
  %v496 = vpop.f32.mrb[0].mxu0
  %v497 = vadd.f32 %v404, %v496
  %v498 = vpop.f32.mrb[0].mxu0
  %v499 = vpop.f32.mrb[0].mxu0
  %v500 = vadd.f32 %v404, %v499
  %v501 = vpop.f32.mrb[0].mxu0
  %502 = vmatprep.mubr.bf16.mxu0 0
  %503 = vmatmul.mubr.bf16.gmra.mrb[0].mxu0 %v144
  %v504 = vpop.f32.mrb[0].mxu0
  %v505 = vadd.f32 %v404, %v504
  %v506 = vpop.f32.mrb[0].mxu0
  %v507 = vpop.f32.mrb[0].mxu0
  %v508 = vadd.f32 %v404, %v507
  %v509 = vpop.f32.mrb[0].mxu0
  %510 = vmatprep.mubr.bf16.mxu0 0
  %511 = vmatmul.mubr.bf16.gmra.mrb[0].mxu0 %v145
  %v512 = vpop.f32.mrb[0].mxu0
  %v513 = vadd.f32 %v404, %v512
  %v514 = vpop.f32.mrb[0].mxu0
  %v515 = vpop.f32.mrb[0].mxu0
  %v516 = vadd.f32 %v404, %v515
  %v517 = vpop.f32.mrb[0].mxu0
  %518 = vmatprep.mubr.bf16.mxu0 0
  %519 = vmatmul.mubr.bf16.gmra.mrb[0].mxu0 %v146
  %v520 = vpop.f32.mrb[0].mxu0
  %v521 = vadd.f32 %v404, %v520
  %v522 = vpop.f32.mrb[0].mxu0
  %v523 = vpop.f32.mrb[0].mxu0
  %v524 = vadd.f32 %v404, %v523
  %v525 = vpop.f32.mrb[0].mxu0
  %526 = vmatprep.mubr.bf16.mxu0 0
  %527 = vmatmul.mubr.bf16.gmra.mrb[0].mxu0 %v147
  %v528 = vpop.f32.mrb[0].mxu0
  %v529 = vadd.f32 %v404, %v528
  %v530 = vpop.f32.mrb[0].mxu0
  %v531 = vpop.f32.mrb[0].mxu0
  %v532 = vadd.f32 %v404, %v531
  %v533 = vpop.f32.mrb[0].mxu0
  %534 = vmatprep.mubr.bf16.mxu0 0
  %535 = vmatmul.mubr.bf16.gmra.mrb[0].mxu0 %v148
  %v536 = vpop.f32.mrb[0].mxu0
  %v537 = vadd.f32 %v404, %v536
  %v538 = vpop.f32.mrb[0].mxu0
  %v539 = vpop.f32.mrb[0].mxu0
  %v540 = vadd.f32 %v404, %v539
  %v541 = vpop.f32.mrb[0].mxu0
  %542 = vmatprep.mubr.bf16.mxu0 0
  %543 = vmatmul.mubr.bf16.gmra.mrb[0].mxu0 %v149
  %v544 = vpop.f32.mrb[0].mxu0
  %v545 = vadd.f32 %v404, %v544
  %v546 = vpop.f32.mrb[0].mxu0
  %v547 = vpop.f32.mrb[0].mxu0
  %v548 = vadd.f32 %v404, %v547
  %v549 = vpop.f32.mrb[0].mxu0
  %550 = vmatprep.mubr.bf16.mxu0 0
  %551 = vmatmul.mubr.bf16.gmra.mrb[0].mxu0 %v150
  %v552 = vpop.f32.mrb[0].mxu0
  %v553 = vadd.f32 %v404, %v552
  %v554 = vpop.f32.mrb[0].mxu0
  %v555 = vpop.f32.mrb[0].mxu0
  %v556 = vadd.f32 %v404, %v555
  %v557 = vpop.f32.mrb[0].mxu0
  %558 = vmatprep.mubr.bf16.mxu0 0
  %559 = vmatmul.mubr.bf16.gmra.mrb[0].mxu0 %v151
  %v560 = vpop.f32.mrb[0].mxu0
  %v561 = vadd.f32 %v404, %v560
  %v562 = vpop.f32.mrb[0].mxu0
  %v563 = vpop.f32.mrb[0].mxu0
  %v564 = vadd.f32 %v404, %v563
  %v565 = vpop.f32.mrb[0].mxu0
  %566 = vmatprep.mubr.bf16.mxu0 0
  %567 = vmatmul.mubr.bf16.gmra.mrb[0].mxu0 %v152
  %v568 = vpop.f32.mrb[0].mxu0
  %v569 = vadd.f32 %v404, %v568
  %v570 = vpop.f32.mrb[0].mxu0
  %v571 = vpop.f32.mrb[0].mxu0
  %v572 = vadd.f32 %v404, %v571
  %v573 = vpop.f32.mrb[0].mxu0
  %574 = vmatprep.mubr.bf16.mxu0 0
  %575 = vmatmul.mubr.bf16.gmra.mrb[0].mxu0 %v153
  %v576 = vpop.f32.mrb[0].mxu0
  %v577 = vadd.f32 %v404, %v576
  %v578 = vpop.f32.mrb[0].mxu0
  %v579 = vpop.f32.mrb[0].mxu0
  %v580 = vadd.f32 %v404, %v579
  %v581 = vpop.f32.mrb[0].mxu0
  %582 = vmatprep.mubr.bf16.mxu0 0
  %583 = vmatmul.mubr.bf16.gmra.mrb[0].mxu0 %v154
  %v584 = vpop.f32.mrb[0].mxu0
  %v585 = vadd.f32 %v404, %v584
  %v586 = vpop.f32.mrb[0].mxu0
  %v587 = vpop.f32.mrb[0].mxu0
  %v588 = vadd.f32 %v404, %v587
  %v589 = vpop.f32.mrb[0].mxu0
  %590 = vmatprep.mubr.bf16.mxu0 0
  %591 = vmatmul.mubr.bf16.gmra.mrb[0].mxu0 %v155
  %v592 = vpop.f32.mrb[0].mxu0
  %v593 = vadd.f32 %v404, %v592
  %v594 = vpop.f32.mrb[0].mxu0
  %v595 = vpop.f32.mrb[0].mxu0
  %v596 = vadd.f32 %v404, %v595
  %v597 = vpop.f32.mrb[0].mxu0
  %598 = vmatprep.mubr.bf16.mxu0 0
  %599 = vmatmul.mubr.bf16.gmra.mrb[0].mxu0 %v156
  %v600 = vpop.f32.mrb[0].mxu0
  %v601 = vadd.f32 %v404, %v600
  %v602 = vpop.f32.mrb[0].mxu0
  %v603 = vpop.f32.mrb[0].mxu0
  %v604 = vadd.f32 %v404, %v603
  %v605 = vpop.f32.mrb[0].mxu0
  %606 = vmatprep.mubr.bf16.mxu0 0
  %607 = vmatmul.mubr.bf16.gmra.mrb[0].mxu0 %v157
  %v608 = vpop.f32.mrb[0].mxu0
  %v609 = vadd.f32 %v404, %v608
  %v610 = vpop.f32.mrb[0].mxu0
  %v611 = vpop.f32.mrb[0].mxu0
  %v612 = vadd.f32 %v404, %v611
  %v613 = vpop.f32.mrb[0].mxu0
  %614 = vdwg.mxu0
  %v615 = vpack.c.bf16 %v260, %v257
  %v616 = vpack.c.bf16 %v268, %v265
  %v617 = vpack.c.bf16 %v276, %v273
  %v618 = vpack.c.bf16 %v284, %v281
  %v619 = vpack.c.bf16 %v292, %v289
  %v620 = vpack.c.bf16 %v300, %v297
  %v621 = vpack.c.bf16 %v308, %v305
  %v622 = vpack.c.bf16 %v316, %v313
  %v623 = vpack.c.bf16 %v324, %v321
  %v624 = vpack.c.bf16 %v332, %v329
  %v625 = vpack.c.bf16 %v340, %v337
  %v626 = vpack.c.bf16 %v348, %v345
  %v627 = vpack.c.bf16 %v356, %v353
  %v628 = vpack.c.bf16 %v364, %v361
  %v629 = vpack.c.bf16 %v372, %v369
  %v630 = vpack.c.bf16 %v380, %v377
  %v647 = vunpack.c.l.b16 %v615
  %v648 = vunpack.c.h.b16 %v615
  %v649 = vunpack.c.l.b16 %v616
  %v650 = vunpack.c.h.b16 %v616
  %v651 = vunpack.c.l.b16 %v617
  %v652 = vunpack.c.h.b16 %v617
  %v653 = vunpack.c.l.b16 %v618
  %v654 = vunpack.c.h.b16 %v618
  %v655 = vunpack.c.l.b16 %v619
  %v656 = vunpack.c.h.b16 %v619
  %v657 = vunpack.c.l.b16 %v620
  %v658 = vunpack.c.h.b16 %v620
  %v659 = vunpack.c.l.b16 %v621
  %v660 = vunpack.c.h.b16 %v621
  %v661 = vunpack.c.l.b16 %v622
  %v662 = vunpack.c.h.b16 %v622
  %v663 = vunpack.c.l.b16 %v623
  %v664 = vunpack.c.h.b16 %v623
  %v665 = vunpack.c.l.b16 %v624
  %v666 = vunpack.c.h.b16 %v624
  %v667 = vunpack.c.l.b16 %v625
  %v668 = vunpack.c.h.b16 %v625
  %v669 = vunpack.c.l.b16 %v626
  %v670 = vunpack.c.h.b16 %v626
  %v671 = vunpack.c.l.b16 %v627
  %v672 = vunpack.c.h.b16 %v627
  %v673 = vunpack.c.l.b16 %v628
  %v674 = vunpack.c.h.b16 %v628
  %v675 = vunpack.c.l.b16 %v629
  %v676 = vunpack.c.h.b16 %v629
  %v677 = vunpack.c.l.b16 %v630
  %v678 = vunpack.c.h.b16 %v630
  %v679 = vpack.c.b16 %v647, %v647
  %v680 = vpack.c.b16 %v648, %v648
  %v681 = vpack.c.b16 %v649, %v649
  %v682 = vpack.c.b16 %v650, %v650
  %v683 = vpack.c.b16 %v651, %v651
  %v684 = vpack.c.b16 %v652, %v652
  %v685 = vpack.c.b16 %v653, %v653
  %v686 = vpack.c.b16 %v654, %v654
  %v687 = vpack.c.b16 %v655, %v655
  %v688 = vpack.c.b16 %v656, %v656
  %v689 = vpack.c.b16 %v657, %v657
  %v690 = vpack.c.b16 %v658, %v658
  %v691 = vpack.c.b16 %v659, %v659
  %v692 = vpack.c.b16 %v660, %v660
  %v693 = vpack.c.b16 %v661, %v661
  %v694 = vpack.c.b16 %v662, %v662
  %v695 = vpack.c.b16 %v663, %v663
  %v696 = vpack.c.b16 %v664, %v664
  %v697 = vpack.c.b16 %v665, %v665
  %v698 = vpack.c.b16 %v666, %v666
  %v699 = vpack.c.b16 %v667, %v667
  %v700 = vpack.c.b16 %v668, %v668
  %v701 = vpack.c.b16 %v669, %v669
  %v702 = vpack.c.b16 %v670, %v670
  %v703 = vpack.c.b16 %v671, %v671
  %v704 = vpack.c.b16 %v672, %v672
  %v705 = vpack.c.b16 %v673, %v673
  %v706 = vpack.c.b16 %v674, %v674
  %v707 = vpack.c.b16 %v675, %v675
  %v708 = vpack.c.b16 %v676, %v676
  %v709 = vpack.c.b16 %v677, %v677
  %v710 = vpack.c.b16 %v678, %v678
  %743 = vst [vmem:[%s5] sm:$0xf] %v679
  %744 = vst [vmem:[%s5 + $0x4] sm:$0xf] %v680
  %745 = vst [vmem:[%s5 + $0x8] sm:$0xf] %v681
  %746 = vst [vmem:[%s5 + $0xc] sm:$0xf] %v682
  %747 = vst [vmem:[%s5 + $0x10] sm:$0xf] %v683
  %748 = vst [vmem:[%s5 + $0x14] sm:$0xf] %v684
  %749 = vst [vmem:[%s5 + $0x18] sm:$0xf] %v685
  %750 = vst [vmem:[%s5 + $0x1c] sm:$0xf] %v686
  %751 = vst [vmem:[%s5 + $0x20] sm:$0xf] %v687
  %752 = vst [vmem:[%s5 + $0x24] sm:$0xf] %v688
  %753 = vst [vmem:[%s5 + $0x28] sm:$0xf] %v689
  %754 = vst [vmem:[%s5 + $0x2c] sm:$0xf] %v690
  %755 = vst [vmem:[%s5 + $0x30] sm:$0xf] %v691
  %756 = vst [vmem:[%s5 + $0x34] sm:$0xf] %v692
  %757 = vst [vmem:[%s5 + $0x38] sm:$0xf] %v693
  %758 = vst [vmem:[%s5 + $0x3c] sm:$0xf] %v694
  %759 = vst [vmem:[%s5 + $0x40] sm:$0xf] %v695
  %760 = vst [vmem:[%s5 + $0x44] sm:$0xf] %v696
  %761 = vst [vmem:[%s5 + $0x48] sm:$0xf] %v697
  %762 = vst [vmem:[%s5 + $0x4c] sm:$0xf] %v698
  %763 = vst [vmem:[%s5 + $0x50] sm:$0xf] %v699
  %764 = vst [vmem:[%s5 + $0x54] sm:$0xf] %v700
  %765 = vst [vmem:[%s5 + $0x58] sm:$0xf] %v701
  %766 = vst [vmem:[%s5 + $0x5c] sm:$0xf] %v702
  %767 = vst [vmem:[%s5 + $0x60] sm:$0xf] %v703
  %768 = vst [vmem:[%s5 + $0x64] sm:$0xf] %v704
  %769 = vst [vmem:[%s5 + $0x68] sm:$0xf] %v705
  %770 = vst [vmem:[%s5 + $0x6c] sm:$0xf] %v706
  %771 = vst [vmem:[%s5 + $0x70] sm:$0xf] %v707
  %772 = vst [vmem:[%s5 + $0x74] sm:$0xf] %v708
  %773 = vst [vmem:[%s5 + $0x78] sm:$0xf] %v709
  %774 = vst [vmem:[%s5 + $0x7c] sm:$0xf] %v710
  %v775 = vpack.c.bf16 %v492, %v489
  %v776 = vpack.c.bf16 %v500, %v497
  %v777 = vpack.c.bf16 %v508, %v505
  %v778 = vpack.c.bf16 %v516, %v513
  %v779 = vpack.c.bf16 %v524, %v521
  %v780 = vpack.c.bf16 %v532, %v529
  %v781 = vpack.c.bf16 %v540, %v537
  %v782 = vpack.c.bf16 %v548, %v545
  %v783 = vpack.c.bf16 %v556, %v553
  %v784 = vpack.c.bf16 %v564, %v561
  %v785 = vpack.c.bf16 %v572, %v569
  %v786 = vpack.c.bf16 %v580, %v577
  %v787 = vpack.c.bf16 %v588, %v585
  %v788 = vpack.c.bf16 %v596, %v593
  %v789 = vpack.c.bf16 %v604, %v601
  %v790 = vpack.c.bf16 %v612, %v609
  %v807 = vunpack.c.l.b16 %v775
  %v808 = vunpack.c.h.b16 %v775
  %v809 = vunpack.c.l.b16 %v776
  %v810 = vunpack.c.h.b16 %v776
  %v811 = vunpack.c.l.b16 %v777
  %v812 = vunpack.c.h.b16 %v777
  %v813 = vunpack.c.l.b16 %v778
  %v814 = vunpack.c.h.b16 %v778
  %v815 = vunpack.c.l.b16 %v779
  %v816 = vunpack.c.h.b16 %v779
  %v817 = vunpack.c.l.b16 %v780
  %v818 = vunpack.c.h.b16 %v780
  %v819 = vunpack.c.l.b16 %v781
  %v820 = vunpack.c.h.b16 %v781
  %v821 = vunpack.c.l.b16 %v782
  %v822 = vunpack.c.h.b16 %v782
  %v823 = vunpack.c.l.b16 %v783
  %v824 = vunpack.c.h.b16 %v783
  %v825 = vunpack.c.l.b16 %v784
  %v826 = vunpack.c.h.b16 %v784
  %v827 = vunpack.c.l.b16 %v785
  %v828 = vunpack.c.h.b16 %v785
  %v829 = vunpack.c.l.b16 %v786
  %v830 = vunpack.c.h.b16 %v786
  %v831 = vunpack.c.l.b16 %v787
  %v832 = vunpack.c.h.b16 %v787
  %v833 = vunpack.c.l.b16 %v788
  %v834 = vunpack.c.h.b16 %v788
  %v835 = vunpack.c.l.b16 %v789
  %v836 = vunpack.c.h.b16 %v789
  %v837 = vunpack.c.l.b16 %v790
  %v838 = vunpack.c.h.b16 %v790
  %v839 = vpack.c.b16 %v807, %v807
  %v840 = vpack.c.b16 %v808, %v808
  %v841 = vpack.c.b16 %v809, %v809
  %v842 = vpack.c.b16 %v810, %v810
  %v843 = vpack.c.b16 %v811, %v811
  %v844 = vpack.c.b16 %v812, %v812
  %v845 = vpack.c.b16 %v813, %v813
  %v846 = vpack.c.b16 %v814, %v814
  %v847 = vpack.c.b16 %v815, %v815
  %v848 = vpack.c.b16 %v816, %v816
  %v849 = vpack.c.b16 %v817, %v817
  %v850 = vpack.c.b16 %v818, %v818
  %v851 = vpack.c.b16 %v819, %v819
  %v852 = vpack.c.b16 %v820, %v820
  %v853 = vpack.c.b16 %v821, %v821
  %v854 = vpack.c.b16 %v822, %v822
  %v855 = vpack.c.b16 %v823, %v823
  %v856 = vpack.c.b16 %v824, %v824
  %v857 = vpack.c.b16 %v825, %v825
  %v858 = vpack.c.b16 %v826, %v826
  %v859 = vpack.c.b16 %v827, %v827
  %v860 = vpack.c.b16 %v828, %v828
  %v861 = vpack.c.b16 %v829, %v829
  %v862 = vpack.c.b16 %v830, %v830
  %v863 = vpack.c.b16 %v831, %v831
  %v864 = vpack.c.b16 %v832, %v832
  %v865 = vpack.c.b16 %v833, %v833
  %v866 = vpack.c.b16 %v834, %v834
  %v867 = vpack.c.b16 %v835, %v835
  %v868 = vpack.c.b16 %v836, %v836
  %v869 = vpack.c.b16 %v837, %v837
  %v870 = vpack.c.b16 %v838, %v838
  %903 = vst [vmem:[%s6] sm:$0xf] %v839
  %904 = vst [vmem:[%s6 + $0x4] sm:$0xf] %v840
  %905 = vst [vmem:[%s6 + $0x8] sm:$0xf] %v841
  %906 = vst [vmem:[%s6 + $0xc] sm:$0xf] %v842
  %907 = vst [vmem:[%s6 + $0x10] sm:$0xf] %v843
  %908 = vst [vmem:[%s6 + $0x14] sm:$0xf] %v844
  %909 = vst [vmem:[%s6 + $0x18] sm:$0xf] %v845
  %910 = vst [vmem:[%s6 + $0x1c] sm:$0xf] %v846
  %911 = vst [vmem:[%s6 + $0x20] sm:$0xf] %v847
  %912 = vst [vmem:[%s6 + $0x24] sm:$0xf] %v848
  %913 = vst [vmem:[%s6 + $0x28] sm:$0xf] %v849
  %914 = vst [vmem:[%s6 + $0x2c] sm:$0xf] %v850
  %915 = vst [vmem:[%s6 + $0x30] sm:$0xf] %v851
  %916 = vst [vmem:[%s6 + $0x34] sm:$0xf] %v852
  %917 = vst [vmem:[%s6 + $0x38] sm:$0xf] %v853
  %918 = vst [vmem:[%s6 + $0x3c] sm:$0xf] %v854
  %919 = vst [vmem:[%s6 + $0x40] sm:$0xf] %v855
  %920 = vst [vmem:[%s6 + $0x44] sm:$0xf] %v856
  %921 = vst [vmem:[%s6 + $0x48] sm:$0xf] %v857
  %922 = vst [vmem:[%s6 + $0x4c] sm:$0xf] %v858
  %923 = vst [vmem:[%s6 + $0x50] sm:$0xf] %v859
  %924 = vst [vmem:[%s6 + $0x54] sm:$0xf] %v860
  %925 = vst [vmem:[%s6 + $0x58] sm:$0xf] %v861
  %926 = vst [vmem:[%s6 + $0x5c] sm:$0xf] %v862
  %927 = vst [vmem:[%s6 + $0x60] sm:$0xf] %v863
  %928 = vst [vmem:[%s6 + $0x64] sm:$0xf] %v864
  %929 = vst [vmem:[%s6 + $0x68] sm:$0xf] %v865
  %930 = vst [vmem:[%s6 + $0x6c] sm:$0xf] %v866
  %931 = vst [vmem:[%s6 + $0x70] sm:$0xf] %v867
  %932 = vst [vmem:[%s6 + $0x74] sm:$0xf] %v868
  %933 = vst [vmem:[%s6 + $0x78] sm:$0xf] %v869
  %934 = vst [vmem:[%s6 + $0x7c] sm:$0xf] %v870
  // Predicated region
  $region22: #{span_attention.2} parent=0 // pred_check
    _
  $region23: #{span_attention.2} parent=0 // pred_check_branch
    %936 = sbr.rel (0) target = $region25
  $region24: #{span_attention.2} parent=0 // pred_region
    _
  $region25: #{span_attention.2} parent=0 // pred_fallthru
    _
  // Predicated region
  $region26: #{span_attention.2} parent=0 // pred_check
    _
  $region27: #{span_attention.2} parent=0 // pred_check_branch
    %938 = sbr.rel (0) target = $region29
  $region28: #{span_attention.2} parent=0 // pred_region
    _
  $region29: #{span_attention.2} parent=0 // pred_fallthru
    _
  // Predicated region
  $region30: #{span_attention.2} parent=0 // pred_check
    _
  $region31: #{span_attention.2} parent=0 // pred_check_branch
    %940 = sbr.rel (0) target = $region33
  $region32: #{span_attention.2} parent=0 // pred_region
    _
  $region33: #{span_attention.2} parent=0 // pred_fallthru
    _
  // Predicated region
  $region34: #{span_attention.2} parent=0 // pred_check
    _
  $region35: #{span_attention.2} parent=0 // pred_check_branch
    %942 = sbr.rel (0) target = $region37
  $region36: #{span_attention.2} parent=0 // pred_region
    _
  $region37: #{span_attention.2} parent=0 // pred_fallthru
    _

</llo_original>
